<compile_context>
chip_gen: v7x
topology: tpu7x:2x2x1
jax: 0.10.0
libtpu: 0.0.40
codegen_flags: <defaults>
</compile_context>

<pallas_src>
import math
import functools

import jax
import jax.numpy as jnp
from jax import lax
from jax.experimental import pallas as pl
from jax.experimental.pallas import tpu as pltpu


def _softmax_last(s):
    """Stable softmax over the last axis, f32 math.  EUP approx reciprocal +
    one Newton-Raphson refinement (~exact 1/d, PyTorch parity)."""
    s = s - jnp.max(s, axis=-1, keepdims=True)
    e = jnp.exp(s)
    d = jnp.sum(e, axis=-1, keepdims=True)
    r = pl.reciprocal(d, approx=True)
    r = r * (2.0 - d * r)                       # one NR step
    return e * r


def _fused_mla_kernel(num_heads,
                      b_ref, c_ref, d_ref,
                      wq_ref, wk_ref, wv_ref, wo_ref,
                      bq_ref, bk_ref, bv_ref, bo_ref,
                      gamma_ref, beta_ref,
                      out_ref, w_ref,
                      x_state):
    """Grid = (batch, layer).  One grid step == one attention layer applied to
    one batch element.  The evolving query state lives in x_state (VMEM, f32)
    across the sequential layer axis; outputs are written once per batch
    element, on its last layer."""
    layer = pl.program_id(1)
    last = pl.num_programs(1) - 1

    L, E = b_ref.shape
    S = c_ref.shape[0]
    H = num_heads
    dh = E // H

    # Initialise the carried query state from the input on the first layer of
    # every batch element (layer axis is innermost, so this fires per batch).
    @pl.when(layer == 0)
    def _():
        x_state[...] = b_ref[...]

    x = x_state[...]                                    # (L, E) f32 residual stream

    # ---- QKV projections: bf16 MXU operands, f32 accumulation --------------
    # (1/sqrt(dh) is already folded into wq / bq.)
    q = jnp.dot(x.astype(jnp.bfloat16), wq_ref[...],
                preferred_element_type=jnp.float32) + bq_ref[...]     # (L, E)
    k = jnp.dot(c_ref[...], wk_ref[...],
                preferred_element_type=jnp.float32) + bk_ref[...]     # (S, E)
    v = jnp.dot(d_ref[...], wv_ref[...],
                preferred_element_type=jnp.float32) + bv_ref[...]     # (S, E)

    q_bf = q.astype(jnp.bfloat16)
    k_bf = k.astype(jnp.bfloat16)
    v_bf = v.astype(jnp.bfloat16)
    wo = wo_ref[...]                                    # (E, E) bf16

    # ---- per-head attention: no reshape/transpose head split or merge ------
    # Heads use static column slices (head-major packing, as in PyTorch) and
    # the output projection decomposes as sum_h ctx_h @ Wo[h*dh:(h+1)*dh, :].
    attn = jnp.zeros((L, E), jnp.float32)
    w_acc = jnp.zeros((L, S), jnp.float32)
    for h in range(H):                                  # small static unroll
        sl = slice(h * dh, (h + 1) * dh)
        qh = q_bf[:, sl]                                # (L, dh)
        kh = k_bf[:, sl]                                # (S, dh)
        vh = v_bf[:, sl]                                # (S, dh)
        # scores = qh @ kh.T, contracting both minor dims (no transpose op)
        s = lax.dot_general(qh, kh, (((1,), (1,)), ((), ())),
                            preferred_element_type=jnp.float32)       # (L, S)
        p = _softmax_last(s)                            # f32
        w_acc = w_acc + p
        ctx = jnp.dot(p.astype(jnp.bfloat16), vh,
                      preferred_element_type=jnp.float32)             # (L, dh)
        attn = attn + jnp.dot(ctx.astype(jnp.bfloat16), wo[sl, :],
                              preferred_element_type=jnp.float32)     # (L, E)

    attn = attn + bo_ref[...]

    # ---- residual + LayerNorm (f32, eps = 1e-5, PyTorch default) -----------
    y = x + attn
    mean = jnp.mean(y, axis=-1, keepdims=True)
    var = jnp.mean((y - mean) ** 2, axis=-1, keepdims=True)
    y = (y - mean) * lax.rsqrt(var + 1e-5)
    y = y * gamma_ref[...] + beta_ref[...]

    x_state[...] = y                                    # carry to next layer

    # ---- write lane-dense 2D outputs once, on the final layer only ---------
    @pl.when(layer == last)
    def _():
        out_ref[...] = y                                # (L, E) rows of (N*L, E)
        w_ref[...] = w_acc * (1.0 / H)                  # head-avg weights (L, S)


def multi_layer_attention(B, C, D, params, num_heads):
    """Pallas equivalent of MultiLayerAttention.forward.

    B: (L, N, E) query; C: (S, N, E) key; D: (S, N, E) value (seq-first, the
    nn.MultiheadAttention default).  Returns (B_out (L, N, E), attn_w
    (N, L, S)) where attn_w are the head-averaged attention weights of the
    last layer."""
    (wq, wk, wv, wo, bq, bk, bv, bo, gamma, beta) = params
    num_layers, E, _ = wq.shape
    L, N, _ = B.shape
    S = C.shape[0]
    assert E % num_heads == 0
    assert L % 8 == 0, "query length must be a multiple of 8 (sublane tiling)"

    # One-time layout change to batch-first.  Key/value only ever feed the MXU,
    # so they are stored/streamed as bf16 (half the DMA + resident VMEM); the
    # query stays f32 because it seeds the residual stream.
    b = jnp.transpose(B, (1, 0, 2))                          # (N, L, E) f32
    c = jnp.transpose(C, (1, 0, 2)).astype(jnp.bfloat16)     # (N, S, E) bf16
    d = jnp.transpose(D, (1, 0, 2)).astype(jnp.bfloat16)     # (N, S, E) bf16

    kernel = functools.partial(_fused_mla_kernel, num_heads)

    def resident(shape):      # per-batch block, constant over the layer axis
        return pl.BlockSpec((None,) + shape, lambda n, l: (n, 0, 0))

    def per_layer(shape):     # layer l's slice, auto double-buffered/prefetched
        return pl.BlockSpec((None,) + shape, lambda n, l: (l, 0, 0))

    # Explicit scoped-VMEM budget: resident blocks + 2x per-layer weight/bias
    # buffers + outputs + scratch, with headroom.
    f32, bf16 = 4, 2
    per_layer_bytes = 2 * (4 * E * E * bf16 + 6 * E * f32)
    resident_bytes = 2 * (L * E * f32 + 2 * S * E * bf16)
    out_bytes = 2 * (L * E + L * S) * f32
    scratch_bytes = L * E * f32
    vmem_limit = min(max(2 * (per_layer_bytes + resident_bytes + out_bytes
                              + scratch_bytes) + (2 << 20), 8 << 20), 64 << 20)

    out2d, w2d = pl.pallas_call(
        kernel,
        out_shape=(jax.ShapeDtypeStruct((N * L, E), jnp.float32),
                   jax.ShapeDtypeStruct((N * L, S), jnp.float32)),
        grid=(N, num_layers),
        in_specs=[resident((L, E)),                       # B (query, layer-0 init)
                  resident((S, E)), resident((S, E)),     # C, D (key / value, bf16)
                  per_layer((E, E)), per_layer((E, E)),
                  per_layer((E, E)), per_layer((E, E)),   # WqT WkT WvT WoT (bf16)
                  per_layer((1, E)), per_layer((1, E)),
                  per_layer((1, E)), per_layer((1, E)),   # bq bk bv bo (f32)
                  per_layer((1, E)), per_layer((1, E))],  # gamma, beta (f32)
        out_specs=[pl.BlockSpec((L, E), lambda n, l: (n, 0)),
                   pl.BlockSpec((L, S), lambda n, l: (n, 0))],
        scratch_shapes=[pltpu.VMEM((L, E), jnp.float32)],
        compiler_params=pltpu.CompilerParams(
            dimension_semantics=("parallel", "arbitrary"),
            vmem_limit_bytes=vmem_limit),
    )(b, c, d, wq, wk, wv, wo, bq, bk, bv, bo, gamma, beta)

    B_out = jnp.transpose(out2d.reshape(N, L, E), (1, 0, 2))   # (L, N, E)
    attn_w = w2d.reshape(N, L, S)                              # (N, L, S)
    return B_out, attn_w


def init_params(key, dim_hidden, num_heads, num_layers):
    """Deterministic synthetic parameters, stacked over layers.

    Projection weights are pre-transposed (q = x @ WqT + bq) and stored in
    bf16 (MXU-only operands); the 1/sqrt(dh) attention scale is folded into
    wq and bq here, once, so the kernel has no per-layer scale multiply.
    LayerNorm uses PyTorch default init (gamma=1, beta=0)."""
    E = dim_hidden
    dh = E // num_heads
    w_scale = 1.0 / math.sqrt(E)
    attn_scale = 1.0 / math.sqrt(dh)
    k = jax.random.split(key, 8)

    def w(kk, extra=1.0):
        return (jax.random.normal(kk, (num_layers, E, E), jnp.float32)
                * (w_scale * extra)).astype(jnp.bfloat16)

    def bias(kk, extra=1.0):
        return jax.random.normal(kk, (num_layers, 1, E), jnp.float32) * (0.01 * extra)

    wq = w(k[0], attn_scale)
    wk = w(k[1])
    wv = w(k[2])
    wo = w(k[3])
    bq = bias(k[4], attn_scale)
    bk = bias(k[5])
    bv = bias(k[6])
    bo = bias(k[7])
    gamma = jnp.ones((num_layers, 1, E), jnp.float32)
    beta = jnp.zeros((num_layers, 1, E), jnp.float32)
    return (wq, wk, wv, wo, bq, bk, bv, bo, gamma, beta)


if __name__ == "__main__":
    # Small shapes consistent with the module: seq=8, batch=2, hidden=32,
    # 4 heads, 2 layers.
    L, S, N, E = 8, 8, 2, 32
    NUM_HEADS, NUM_LAYERS = 4, 2

    key = jax.random.PRNGKey(0)
    kb, kc, kd, kp = jax.random.split(key, 4)
    B = jax.random.normal(kb, (L, N, E), jnp.float32)   # query (L, N, E)
    C = jax.random.normal(kc, (S, N, E), jnp.float32)   # key   (S, N, E)
    D = jax.random.normal(kd, (S, N, E), jnp.float32)   # value (S, N, E)

    params = init_params(kp, E, NUM_HEADS, NUM_LAYERS)

    B_out, attn_w = multi_layer_attention(B, C, D, params, NUM_HEADS)
    jax.block_until_ready((B_out, attn_w))

    assert B_out.shape == (L, N, E)
    assert attn_w.shape == (N, L, S)
    assert bool(jnp.all(jnp.isfinite(B_out)))
    # last-layer attention weights are a softmax average: rows sum to 1
    assert bool(jnp.allclose(jnp.sum(attn_w, axis=-1), 1.0, atol=1e-3))
    print("KERNEL_OK")
</pallas_src>

<mosaic_0001>
module attributes {stable_mosaic.version = 11 : i64} {
  func.func @_fused_mla_kernel(%arg0: i32, %arg1: i32, %arg2: memref<1x8x32xf32, #tpu.memory_space<vmem>>, %arg3: memref<1x8x32xbf16, #tpu.memory_space<vmem>>, %arg4: memref<1x8x32xbf16, #tpu.memory_space<vmem>>, %arg5: memref<1x32x32xbf16, #tpu.memory_space<vmem>>, %arg6: memref<1x32x32xbf16, #tpu.memory_space<vmem>>, %arg7: memref<1x32x32xbf16, #tpu.memory_space<vmem>>, %arg8: memref<1x32x32xbf16, #tpu.memory_space<vmem>>, %arg9: memref<1x1x32xf32, #tpu.memory_space<vmem>>, %arg10: memref<1x1x32xf32, #tpu.memory_space<vmem>>, %arg11: memref<1x1x32xf32, #tpu.memory_space<vmem>>, %arg12: memref<1x1x32xf32, #tpu.memory_space<vmem>>, %arg13: memref<1x1x32xf32, #tpu.memory_space<vmem>>, %arg14: memref<1x1x32xf32, #tpu.memory_space<vmem>>, %arg15: memref<8x32xf32, #tpu.memory_space<vmem>>, %arg16: memref<8x8xf32, #tpu.memory_space<vmem>>, %arg17: memref<8x32xf32, #tpu.memory_space<vmem>>) attributes {dimension_semantics = [#tpu.dimension_semantics<parallel>, #tpu.dimension_semantics<arbitrary>], iteration_bounds = array<i64: 2, 2>, scalar_prefetch = 0 : i64, scratch_operands = 1 : i64, tpu.core_type = #tpu.core_type<tc>, window_params = [{transform_indices = @transform_0, window_bounds = array<i64: 1, 8, 32>}, {transform_indices = @transform_1, window_bounds = array<i64: 1, 8, 32>}, {transform_indices = @transform_2, window_bounds = array<i64: 1, 8, 32>}, {transform_indices = @transform_3, window_bounds = array<i64: 1, 32, 32>}, {transform_indices = @transform_4, window_bounds = array<i64: 1, 32, 32>}, {transform_indices = @transform_5, window_bounds = array<i64: 1, 32, 32>}, {transform_indices = @transform_6, window_bounds = array<i64: 1, 32, 32>}, {transform_indices = @transform_7, window_bounds = array<i64: 1, 1, 32>}, {transform_indices = @transform_8, window_bounds = array<i64: 1, 1, 32>}, {transform_indices = @transform_9, window_bounds = array<i64: 1, 1, 32>}, {transform_indices = @transform_10, window_bounds = array<i64: 1, 1, 32>}, {transform_indices = @transform_11, window_bounds = array<i64: 1, 1, 32>}, {transform_indices = @transform_12, window_bounds = array<i64: 1, 1, 32>}, {transform_indices = @transform_13, window_bounds = array<i64: 8, 32>}, {transform_indices = @transform_14, window_bounds = array<i64: 8, 8>}]} {
    %c0_i32 = arith.constant 0 : i32
    %0 = arith.cmpi eq, %arg1, %c0_i32 : i32
    %1 = arith.extui %0 : i1 to i32
    %c0_i32_0 = arith.constant 0 : i32
    %2 = arith.cmpi ne, %1, %c0_i32_0 : i32
    scf.if %2 {
      %c0_74 = arith.constant 0 : index
      %c0_75 = arith.constant 0 : index
      %c0_76 = arith.constant 0 : index
      %172 = vector.load %arg2[%c0_74, %c0_75, %c0_76] : memref<1x8x32xf32, #tpu.memory_space<vmem>>, vector<1x8x32xf32>
      %173 = vector.shape_cast %172 : vector<1x8x32xf32> to vector<8x32xf32>
      %c0_77 = arith.constant 0 : index
      %c0_78 = arith.constant 0 : index
      %174 = vector.load %arg17[%c0_77, %c0_78] : memref<8x32xf32, #tpu.memory_space<vmem>>, vector<8x32xf32>
      tpu.vector_store %arg17[%c0_77, %c0_78], %173 {strides = array<i32>} : memref<8x32xf32, #tpu.memory_space<vmem>>, vector<8x32xf32>,
    } else {
    }
    %c0 = arith.constant 0 : index
    %c0_1 = arith.constant 0 : index
    %3 = vector.load %arg17[%c0, %c0_1] : memref<8x32xf32, #tpu.memory_space<vmem>>, vector<8x32xf32>
    %4 = arith.truncf %3 : vector<8x32xf32> to vector<8x32xbf16>
    %c0_2 = arith.constant 0 : index
    %c0_3 = arith.constant 0 : index
    %c0_4 = arith.constant 0 : index
    %5 = vector.load %arg5[%c0_2, %c0_3, %c0_4] : memref<1x32x32xbf16, #tpu.memory_space<vmem>>, vector<1x32x32xbf16>
    %6 = vector.shape_cast %5 : vector<1x32x32xbf16> to vector<32x32xbf16>
    %cst = arith.constant dense<0.000000e+00> : vector<8x32xf32>
    %7 = tpu.matmul %4, %6, %cst {dimension_numbers = #tpu.dot_dimension_numbers<[1], [0], [0], [1], [0, 0, 1, 1], [], []>} : vector<8x32xbf16>, vector<32x32xbf16>, vector<8x32xf32> -> vector<8x32xf32>
    %c0_5 = arith.constant 0 : index
    %c0_6 = arith.constant 0 : index
    %c0_7 = arith.constant 0 : index
    %8 = vector.load %arg9[%c0_5, %c0_6, %c0_7] : memref<1x1x32xf32, #tpu.memory_space<vmem>>, vector<1x1x32xf32>
    %9 = vector.shape_cast %8 : vector<1x1x32xf32> to vector<1x32xf32>
    %10 = vector.broadcast %9 : vector<1x32xf32> to vector<8x32xf32>
    %11 = arith.addf %7, %10 : vector<8x32xf32>
    %c0_8 = arith.constant 0 : index
    %c0_9 = arith.constant 0 : index
    %c0_10 = arith.constant 0 : index
    %12 = vector.load %arg3[%c0_8, %c0_9, %c0_10] : memref<1x8x32xbf16, #tpu.memory_space<vmem>>, vector<1x8x32xbf16>
    %13 = vector.shape_cast %12 : vector<1x8x32xbf16> to vector<8x32xbf16>
    %c0_11 = arith.constant 0 : index
    %c0_12 = arith.constant 0 : index
    %c0_13 = arith.constant 0 : index
    %14 = vector.load %arg6[%c0_11, %c0_12, %c0_13] : memref<1x32x32xbf16, #tpu.memory_space<vmem>>, vector<1x32x32xbf16>
    %15 = vector.shape_cast %14 : vector<1x32x32xbf16> to vector<32x32xbf16>
    %cst_14 = arith.constant dense<0.000000e+00> : vector<8x32xf32>
    %16 = tpu.matmul %13, %15, %cst_14 {dimension_numbers = #tpu.dot_dimension_numbers<[1], [0], [0], [1], [0, 0, 1, 1], [], []>} : vector<8x32xbf16>, vector<32x32xbf16>, vector<8x32xf32> -> vector<8x32xf32>
    %c0_15 = arith.constant 0 : index
    %c0_16 = arith.constant 0 : index
    %c0_17 = arith.constant 0 : index
    %17 = vector.load %arg10[%c0_15, %c0_16, %c0_17] : memref<1x1x32xf32, #tpu.memory_space<vmem>>, vector<1x1x32xf32>
    %18 = vector.shape_cast %17 : vector<1x1x32xf32> to vector<1x32xf32>
    %19 = vector.broadcast %18 : vector<1x32xf32> to vector<8x32xf32>
    %20 = arith.addf %16, %19 : vector<8x32xf32>
    %c0_18 = arith.constant 0 : index
    %c0_19 = arith.constant 0 : index
    %c0_20 = arith.constant 0 : index
    %21 = vector.load %arg4[%c0_18, %c0_19, %c0_20] : memref<1x8x32xbf16, #tpu.memory_space<vmem>>, vector<1x8x32xbf16>
    %22 = vector.shape_cast %21 : vector<1x8x32xbf16> to vector<8x32xbf16>
    %c0_21 = arith.constant 0 : index
    %c0_22 = arith.constant 0 : index
    %c0_23 = arith.constant 0 : index
    %23 = vector.load %arg7[%c0_21, %c0_22, %c0_23] : memref<1x32x32xbf16, #tpu.memory_space<vmem>>, vector<1x32x32xbf16>
    %24 = vector.shape_cast %23 : vector<1x32x32xbf16> to vector<32x32xbf16>
    %cst_24 = arith.constant dense<0.000000e+00> : vector<8x32xf32>
    %25 = tpu.matmul %22, %24, %cst_24 {dimension_numbers = #tpu.dot_dimension_numbers<[1], [0], [0], [1], [0, 0, 1, 1], [], []>} : vector<8x32xbf16>, vector<32x32xbf16>, vector<8x32xf32> -> vector<8x32xf32>
    %c0_25 = arith.constant 0 : index
    %c0_26 = arith.constant 0 : index
    %c0_27 = arith.constant 0 : index
    %26 = vector.load %arg11[%c0_25, %c0_26, %c0_27] : memref<1x1x32xf32, #tpu.memory_space<vmem>>, vector<1x1x32xf32>
    %27 = vector.shape_cast %26 : vector<1x1x32xf32> to vector<1x32xf32>
    %28 = vector.broadcast %27 : vector<1x32xf32> to vector<8x32xf32>
    %29 = arith.addf %25, %28 : vector<8x32xf32>
    %30 = arith.truncf %11 : vector<8x32xf32> to vector<8x32xbf16>
    %31 = arith.truncf %20 : vector<8x32xf32> to vector<8x32xbf16>
    %32 = arith.truncf %29 : vector<8x32xf32> to vector<8x32xbf16>
    %c0_28 = arith.constant 0 : index
    %c0_29 = arith.constant 0 : index
    %c0_30 = arith.constant 0 : index
    %33 = vector.load %arg8[%c0_28, %c0_29, %c0_30] : memref<1x32x32xbf16, #tpu.memory_space<vmem>>, vector<1x32x32xbf16>
    %34 = vector.shape_cast %33 : vector<1x32x32xbf16> to vector<32x32xbf16>
    %cst_31 = arith.constant 0.000000e+00 : f32
    %35 = vector.broadcast %cst_31 : f32 to vector<8x32xf32>
    %cst_32 = arith.constant 0.000000e+00 : f32
    %36 = vector.broadcast %cst_32 : f32 to vector<8x8xf32>
    %37 = vector.extract_strided_slice %30 {offsets = [0, 0], sizes = [8, 8], strides = [1, 1]} : vector<8x32xbf16> to vector<8x8xbf16>
    %38 = vector.extract_strided_slice %31 {offsets = [0, 0], sizes = [8, 8], strides = [1, 1]} : vector<8x32xbf16> to vector<8x8xbf16>
    %39 = vector.extract_strided_slice %32 {offsets = [0, 0], sizes = [8, 8], strides = [1, 1]} : vector<8x32xbf16> to vector<8x8xbf16>
    %cst_33 = arith.constant dense<0.000000e+00> : vector<8x8xf32>
    %40 = tpu.matmul %37, %38, %cst_33 {dimension_numbers = #tpu.dot_dimension_numbers<[1], [1], [0], [0], [0, 0, 1, 0], [], []>} : vector<8x8xbf16>, vector<8x8xbf16>, vector<8x8xf32> -> vector<8x8xf32>
    %cst_34 = arith.constant dense<0xFF800000> : vector<8xf32>
    %41 = vector.multi_reduction <maximumf>, %40, %cst_34 [1] : vector<8x8xf32> to vector<8xf32>
    %42 = vector.shape_cast %41 : vector<8xf32> to vector<8x1xf32>
    %43 = vector.broadcast %42 : vector<8x1xf32> to vector<8x8xf32>
    %44 = arith.subf %40, %43 : vector<8x8xf32>
    %45 = math.exp %44 : vector<8x8xf32>
    %cst_35 = arith.constant dense<0.000000e+00> : vector<8xf32>
    %46 = vector.multi_reduction <add>, %45, %cst_35 [1] : vector<8x8xf32> to vector<8xf32>
    %47 = vector.shape_cast %46 : vector<8xf32> to vector<8x1xf32>
    %48 = tpu.reciprocal %47 {approx = true} : vector<8x1xf32> -> vector<8x1xf32>
    %49 = arith.mulf %47, %48 : vector<8x1xf32>
    %cst_36 = arith.constant 2.000000e+00 : f32
    %50 = vector.broadcast %cst_36 : f32 to vector<8x1xf32>
    %51 = arith.subf %50, %49 : vector<8x1xf32>
    %52 = arith.mulf %48, %51 : vector<8x1xf32>
    %53 = vector.broadcast %52 : vector<8x1xf32> to vector<8x8xf32>
    %54 = arith.mulf %45, %53 : vector<8x8xf32>
    %55 = arith.addf %36, %54 : vector<8x8xf32>
    %56 = arith.truncf %54 : vector<8x8xf32> to vector<8x8xbf16>
    %cst_37 = arith.constant dense<0.000000e+00> : vector<8x8xf32>
    %57 = tpu.matmul %56, %39, %cst_37 {dimension_numbers = #tpu.dot_dimension_numbers<[1], [0], [0], [1], [0, 0, 1, 1], [], []>} : vector<8x8xbf16>, vector<8x8xbf16>, vector<8x8xf32> -> vector<8x8xf32>
    %58 = arith.truncf %57 : vector<8x8xf32> to vector<8x8xbf16>
    %59 = vector.extract_strided_slice %34 {offsets = [0, 0], sizes = [8, 32], strides = [1, 1]} : vector<32x32xbf16> to vector<8x32xbf16>
    %cst_38 = arith.constant dense<0.000000e+00> : vector<8x32xf32>
    %60 = tpu.matmul %58, %59, %cst_38 {dimension_numbers = #tpu.dot_dimension_numbers<[1], [0], [0], [1], [0, 0, 1, 1], [], []>} : vector<8x8xbf16>, vector<8x32xbf16>, vector<8x32xf32> -> vector<8x32xf32>
    %61 = arith.addf %35, %60 : vector<8x32xf32>
    %62 = vector.extract_strided_slice %30 {offsets = [0, 8], sizes = [8, 8], strides = [1, 1]} : vector<8x32xbf16> to vector<8x8xbf16>
    %63 = vector.extract_strided_slice %31 {offsets = [0, 8], sizes = [8, 8], strides = [1, 1]} : vector<8x32xbf16> to vector<8x8xbf16>
    %64 = vector.extract_strided_slice %32 {offsets = [0, 8], sizes = [8, 8], strides = [1, 1]} : vector<8x32xbf16> to vector<8x8xbf16>
    %cst_39 = arith.constant dense<0.000000e+00> : vector<8x8xf32>
    %65 = tpu.matmul %62, %63, %cst_39 {dimension_numbers = #tpu.dot_dimension_numbers<[1], [1], [0], [0], [0, 0, 1, 0], [], []>} : vector<8x8xbf16>, vector<8x8xbf16>, vector<8x8xf32> -> vector<8x8xf32>
    %cst_40 = arith.constant dense<0xFF800000> : vector<8xf32>
    %66 = vector.multi_reduction <maximumf>, %65, %cst_40 [1] : vector<8x8xf32> to vector<8xf32>
    %67 = vector.shape_cast %66 : vector<8xf32> to vector<8x1xf32>
    %68 = vector.broadcast %67 : vector<8x1xf32> to vector<8x8xf32>
    %69 = arith.subf %65, %68 : vector<8x8xf32>
    %70 = math.exp %69 : vector<8x8xf32>
    %cst_41 = arith.constant dense<0.000000e+00> : vector<8xf32>
    %71 = vector.multi_reduction <add>, %70, %cst_41 [1] : vector<8x8xf32> to vector<8xf32>
    %72 = vector.shape_cast %71 : vector<8xf32> to vector<8x1xf32>
    %73 = tpu.reciprocal %72 {approx = true} : vector<8x1xf32> -> vector<8x1xf32>
    %74 = arith.mulf %72, %73 : vector<8x1xf32>
    %cst_42 = arith.constant 2.000000e+00 : f32
    %75 = vector.broadcast %cst_42 : f32 to vector<8x1xf32>
    %76 = arith.subf %75, %74 : vector<8x1xf32>
    %77 = arith.mulf %73, %76 : vector<8x1xf32>
    %78 = vector.broadcast %77 : vector<8x1xf32> to vector<8x8xf32>
    %79 = arith.mulf %70, %78 : vector<8x8xf32>
    %80 = arith.addf %55, %79 : vector<8x8xf32>
    %81 = arith.truncf %79 : vector<8x8xf32> to vector<8x8xbf16>
    %cst_43 = arith.constant dense<0.000000e+00> : vector<8x8xf32>
    %82 = tpu.matmul %81, %64, %cst_43 {dimension_numbers = #tpu.dot_dimension_numbers<[1], [0], [0], [1], [0, 0, 1, 1], [], []>} : vector<8x8xbf16>, vector<8x8xbf16>, vector<8x8xf32> -> vector<8x8xf32>
    %83 = arith.truncf %82 : vector<8x8xf32> to vector<8x8xbf16>
    %84 = vector.extract_strided_slice %34 {offsets = [8, 0], sizes = [8, 32], strides = [1, 1]} : vector<32x32xbf16> to vector<8x32xbf16>
    %cst_44 = arith.constant dense<0.000000e+00> : vector<8x32xf32>
    %85 = tpu.matmul %83, %84, %cst_44 {dimension_numbers = #tpu.dot_dimension_numbers<[1], [0], [0], [1], [0, 0, 1, 1], [], []>} : vector<8x8xbf16>, vector<8x32xbf16>, vector<8x32xf32> -> vector<8x32xf32>
    %86 = arith.addf %61, %85 : vector<8x32xf32>
    %87 = vector.extract_strided_slice %30 {offsets = [0, 16], sizes = [8, 8], strides = [1, 1]} : vector<8x32xbf16> to vector<8x8xbf16>
    %88 = vector.extract_strided_slice %31 {offsets = [0, 16], sizes = [8, 8], strides = [1, 1]} : vector<8x32xbf16> to vector<8x8xbf16>
    %89 = vector.extract_strided_slice %32 {offsets = [0, 16], sizes = [8, 8], strides = [1, 1]} : vector<8x32xbf16> to vector<8x8xbf16>
    %cst_45 = arith.constant dense<0.000000e+00> : vector<8x8xf32>
    %90 = tpu.matmul %87, %88, %cst_45 {dimension_numbers = #tpu.dot_dimension_numbers<[1], [1], [0], [0], [0, 0, 1, 0], [], []>} : vector<8x8xbf16>, vector<8x8xbf16>, vector<8x8xf32> -> vector<8x8xf32>
    %cst_46 = arith.constant dense<0xFF800000> : vector<8xf32>
    %91 = vector.multi_reduction <maximumf>, %90, %cst_46 [1] : vector<8x8xf32> to vector<8xf32>
    %92 = vector.shape_cast %91 : vector<8xf32> to vector<8x1xf32>
    %93 = vector.broadcast %92 : vector<8x1xf32> to vector<8x8xf32>
    %94 = arith.subf %90, %93 : vector<8x8xf32>
    %95 = math.exp %94 : vector<8x8xf32>
    %cst_47 = arith.constant dense<0.000000e+00> : vector<8xf32>
    %96 = vector.multi_reduction <add>, %95, %cst_47 [1] : vector<8x8xf32> to vector<8xf32>
    %97 = vector.shape_cast %96 : vector<8xf32> to vector<8x1xf32>
    %98 = tpu.reciprocal %97 {approx = true} : vector<8x1xf32> -> vector<8x1xf32>
    %99 = arith.mulf %97, %98 : vector<8x1xf32>
    %cst_48 = arith.constant 2.000000e+00 : f32
    %100 = vector.broadcast %cst_48 : f32 to vector<8x1xf32>
    %101 = arith.subf %100, %99 : vector<8x1xf32>
    %102 = arith.mulf %98, %101 : vector<8x1xf32>
    %103 = vector.broadcast %102 : vector<8x1xf32> to vector<8x8xf32>
    %104 = arith.mulf %95, %103 : vector<8x8xf32>
    %105 = arith.addf %80, %104 : vector<8x8xf32>
    %106 = arith.truncf %104 : vector<8x8xf32> to vector<8x8xbf16>
    %cst_49 = arith.constant dense<0.000000e+00> : vector<8x8xf32>
    %107 = tpu.matmul %106, %89, %cst_49 {dimension_numbers = #tpu.dot_dimension_numbers<[1], [0], [0], [1], [0, 0, 1, 1], [], []>} : vector<8x8xbf16>, vector<8x8xbf16>, vector<8x8xf32> -> vector<8x8xf32>
    %108 = arith.truncf %107 : vector<8x8xf32> to vector<8x8xbf16>
    %109 = vector.extract_strided_slice %34 {offsets = [16, 0], sizes = [8, 32], strides = [1, 1]} : vector<32x32xbf16> to vector<8x32xbf16>
    %cst_50 = arith.constant dense<0.000000e+00> : vector<8x32xf32>
    %110 = tpu.matmul %108, %109, %cst_50 {dimension_numbers = #tpu.dot_dimension_numbers<[1], [0], [0], [1], [0, 0, 1, 1], [], []>} : vector<8x8xbf16>, vector<8x32xbf16>, vector<8x32xf32> -> vector<8x32xf32>
    %111 = arith.addf %86, %110 : vector<8x32xf32>
    %112 = vector.extract_strided_slice %30 {offsets = [0, 24], sizes = [8, 8], strides = [1, 1]} : vector<8x32xbf16> to vector<8x8xbf16>
    %113 = vector.extract_strided_slice %31 {offsets = [0, 24], sizes = [8, 8], strides = [1, 1]} : vector<8x32xbf16> to vector<8x8xbf16>
    %114 = vector.extract_strided_slice %32 {offsets = [0, 24], sizes = [8, 8], strides = [1, 1]} : vector<8x32xbf16> to vector<8x8xbf16>
    %cst_51 = arith.constant dense<0.000000e+00> : vector<8x8xf32>
    %115 = tpu.matmul %112, %113, %cst_51 {dimension_numbers = #tpu.dot_dimension_numbers<[1], [1], [0], [0], [0, 0, 1, 0], [], []>} : vector<8x8xbf16>, vector<8x8xbf16>, vector<8x8xf32> -> vector<8x8xf32>
    %cst_52 = arith.constant dense<0xFF800000> : vector<8xf32>
    %116 = vector.multi_reduction <maximumf>, %115, %cst_52 [1] : vector<8x8xf32> to vector<8xf32>
    %117 = vector.shape_cast %116 : vector<8xf32> to vector<8x1xf32>
    %118 = vector.broadcast %117 : vector<8x1xf32> to vector<8x8xf32>
    %119 = arith.subf %115, %118 : vector<8x8xf32>
    %120 = math.exp %119 : vector<8x8xf32>
    %cst_53 = arith.constant dense<0.000000e+00> : vector<8xf32>
    %121 = vector.multi_reduction <add>, %120, %cst_53 [1] : vector<8x8xf32> to vector<8xf32>
    %122 = vector.shape_cast %121 : vector<8xf32> to vector<8x1xf32>
    %123 = tpu.reciprocal %122 {approx = true} : vector<8x1xf32> -> vector<8x1xf32>
    %124 = arith.mulf %122, %123 : vector<8x1xf32>
    %cst_54 = arith.constant 2.000000e+00 : f32
    %125 = vector.broadcast %cst_54 : f32 to vector<8x1xf32>
    %126 = arith.subf %125, %124 : vector<8x1xf32>
    %127 = arith.mulf %123, %126 : vector<8x1xf32>
    %128 = vector.broadcast %127 : vector<8x1xf32> to vector<8x8xf32>
    %129 = arith.mulf %120, %128 : vector<8x8xf32>
    %130 = arith.addf %105, %129 : vector<8x8xf32>
    %131 = arith.truncf %129 : vector<8x8xf32> to vector<8x8xbf16>
    %cst_55 = arith.constant dense<0.000000e+00> : vector<8x8xf32>
    %132 = tpu.matmul %131, %114, %cst_55 {dimension_numbers = #tpu.dot_dimension_numbers<[1], [0], [0], [1], [0, 0, 1, 1], [], []>} : vector<8x8xbf16>, vector<8x8xbf16>, vector<8x8xf32> -> vector<8x8xf32>
    %133 = arith.truncf %132 : vector<8x8xf32> to vector<8x8xbf16>
    %134 = vector.extract_strided_slice %34 {offsets = [24, 0], sizes = [8, 32], strides = [1, 1]} : vector<32x32xbf16> to vector<8x32xbf16>
    %cst_56 = arith.constant dense<0.000000e+00> : vector<8x32xf32>
    %135 = tpu.matmul %133, %134, %cst_56 {dimension_numbers = #tpu.dot_dimension_numbers<[1], [0], [0], [1], [0, 0, 1, 1], [], []>} : vector<8x8xbf16>, vector<8x32xbf16>, vector<8x32xf32> -> vector<8x32xf32>
    %136 = arith.addf %111, %135 : vector<8x32xf32>
    %c0_57 = arith.constant 0 : index
    %c0_58 = arith.constant 0 : index
    %c0_59 = arith.constant 0 : index
    %137 = vector.load %arg12[%c0_57, %c0_58, %c0_59] : memref<1x1x32xf32, #tpu.memory_space<vmem>>, vector<1x1x32xf32>
    %138 = vector.shape_cast %137 : vector<1x1x32xf32> to vector<1x32xf32>
    %139 = vector.broadcast %138 : vector<1x32xf32> to vector<8x32xf32>
    %140 = arith.addf %136, %139 : vector<8x32xf32>
    %141 = arith.addf %3, %140 : vector<8x32xf32>
    %cst_60 = arith.constant dense<0.000000e+00> : vector<8xf32>
    %142 = vector.multi_reduction <add>, %141, %cst_60 [1] : vector<8x32xf32> to vector<8xf32>
    %143 = vector.shape_cast %142 : vector<8xf32> to vector<8x1xf32>
    %cst_61 = arith.constant 3.200000e+01 : f32
    %144 = vector.broadcast %cst_61 : f32 to vector<8x1xf32>
    %145 = arith.divf %143, %144 : vector<8x1xf32>
    %146 = vector.broadcast %145 : vector<8x1xf32> to vector<8x32xf32>
    %147 = arith.subf %141, %146 : vector<8x32xf32>
    %148 = arith.mulf %147, %147 : vector<8x32xf32>
    %cst_62 = arith.constant dense<0.000000e+00> : vector<8xf32>
    %149 = vector.multi_reduction <add>, %148, %cst_62 [1] : vector<8x32xf32> to vector<8xf32>
    %150 = vector.shape_cast %149 : vector<8xf32> to vector<8x1xf32>
    %cst_63 = arith.constant 3.200000e+01 : f32
    %151 = vector.broadcast %cst_63 : f32 to vector<8x1xf32>
    %152 = arith.divf %150, %151 : vector<8x1xf32>
    %153 = vector.broadcast %145 : vector<8x1xf32> to vector<8x32xf32>
    %154 = arith.subf %141, %153 : vector<8x32xf32>
    %cst_64 = arith.constant 9.99999974E-6 : f32
    %155 = vector.broadcast %cst_64 : f32 to vector<8x1xf32>
    %156 = arith.addf %152, %155 : vector<8x1xf32>
    %157 = math.rsqrt %156 : vector<8x1xf32>
    %158 = vector.broadcast %157 : vector<8x1xf32> to vector<8x32xf32>
    %159 = arith.mulf %154, %158 : vector<8x32xf32>
    %c0_65 = arith.constant 0 : index
    %c0_66 = arith.constant 0 : index
    %c0_67 = arith.constant 0 : index
    %160 = vector.load %arg13[%c0_65, %c0_66, %c0_67] : memref<1x1x32xf32, #tpu.memory_space<vmem>>, vector<1x1x32xf32>
    %161 = vector.shape_cast %160 : vector<1x1x32xf32> to vector<1x32xf32>
    %162 = vector.broadcast %161 : vector<1x32xf32> to vector<8x32xf32>
    %163 = arith.mulf %159, %162 : vector<8x32xf32>
    %c0_68 = arith.constant 0 : index
    %c0_69 = arith.constant 0 : index
    %c0_70 = arith.constant 0 : index
    %164 = vector.load %arg14[%c0_68, %c0_69, %c0_70] : memref<1x1x32xf32, #tpu.memory_space<vmem>>, vector<1x1x32xf32>
    %165 = vector.shape_cast %164 : vector<1x1x32xf32> to vector<1x32xf32>
    %166 = vector.broadcast %165 : vector<1x32xf32> to vector<8x32xf32>
    %167 = arith.addf %163, %166 : vector<8x32xf32>
    %c0_71 = arith.constant 0 : index
    %c0_72 = arith.constant 0 : index
    %168 = vector.load %arg17[%c0_71, %c0_72] : memref<8x32xf32, #tpu.memory_space<vmem>>, vector<8x32xf32>
    tpu.vector_store %arg17[%c0_71, %c0_72], %167 {strides = array<i32>} : memref<8x32xf32, #tpu.memory_space<vmem>>, vector<8x32xf32>,
    %c1_i32 = arith.constant 1 : i32
    %169 = arith.cmpi eq, %arg1, %c1_i32 : i32
    %170 = arith.extui %169 : i1 to i32
    %c0_i32_73 = arith.constant 0 : i32
    %171 = arith.cmpi ne, %170, %c0_i32_73 : i32
    scf.if %171 {
      %c0_74 = arith.constant 0 : index
      %c0_75 = arith.constant 0 : index
      %172 = vector.load %arg15[%c0_74, %c0_75] : memref<8x32xf32, #tpu.memory_space<vmem>>, vector<8x32xf32>
      tpu.vector_store %arg15[%c0_74, %c0_75], %167 {strides = array<i32>} : memref<8x32xf32, #tpu.memory_space<vmem>>, vector<8x32xf32>,
      %cst_76 = arith.constant 2.500000e-01 : f32
      %173 = vector.broadcast %cst_76 : f32 to vector<8x8xf32>
      %174 = arith.mulf %130, %173 : vector<8x8xf32>
      %c0_77 = arith.constant 0 : index
      %c0_78 = arith.constant 0 : index
      %175 = vector.load %arg16[%c0_77, %c0_78] : memref<8x8xf32, #tpu.memory_space<vmem>>, vector<8x8xf32>
      tpu.vector_store %arg16[%c0_77, %c0_78], %174 {strides = array<i32>} : memref<8x8xf32, #tpu.memory_space<vmem>>, vector<8x8xf32>,
    } else {
    }
    return
  }
  func.func @transform_0(%arg0: i32, %arg1: i32) -> (i32, i32, i32) {
    %c0_i32 = arith.constant 0 : i32
    %c0_i32_0 = arith.constant 0 : i32
    %c0_i32_1 = arith.constant 0 : i32
    return %arg0, %c0_i32, %c0_i32_0 : i32, i32, i32
  }
  func.func @transform_1(%arg0: i32, %arg1: i32) -> (i32, i32, i32) {
    %c0_i32 = arith.constant 0 : i32
    %c0_i32_0 = arith.constant 0 : i32
    %c0_i32_1 = arith.constant 0 : i32
    return %arg0, %c0_i32, %c0_i32_0 : i32, i32, i32
  }
  func.func @transform_2(%arg0: i32, %arg1: i32) -> (i32, i32, i32) {
    %c0_i32 = arith.constant 0 : i32
    %c0_i32_0 = arith.constant 0 : i32
    %c0_i32_1 = arith.constant 0 : i32
    return %arg0, %c0_i32, %c0_i32_0 : i32, i32, i32
  }
  func.func @transform_3(%arg0: i32, %arg1: i32) -> (i32, i32, i32) {
    %c0_i32 = arith.constant 0 : i32
    %c0_i32_0 = arith.constant 0 : i32
    %c0_i32_1 = arith.constant 0 : i32
    return %arg1, %c0_i32, %c0_i32_0 : i32, i32, i32
  }
  func.func @transform_4(%arg0: i32, %arg1: i32) -> (i32, i32, i32) {
    %c0_i32 = arith.constant 0 : i32
    %c0_i32_0 = arith.constant 0 : i32
    %c0_i32_1 = arith.constant 0 : i32
    return %arg1, %c0_i32, %c0_i32_0 : i32, i32, i32
  }
  func.func @transform_5(%arg0: i32, %arg1: i32) -> (i32, i32, i32) {
    %c0_i32 = arith.constant 0 : i32
    %c0_i32_0 = arith.constant 0 : i32
    %c0_i32_1 = arith.constant 0 : i32
    return %arg1, %c0_i32, %c0_i32_0 : i32, i32, i32
  }
  func.func @transform_6(%arg0: i32, %arg1: i32) -> (i32, i32, i32) {
    %c0_i32 = arith.constant 0 : i32
    %c0_i32_0 = arith.constant 0 : i32
    %c0_i32_1 = arith.constant 0 : i32
    return %arg1, %c0_i32, %c0_i32_0 : i32, i32, i32
  }
  func.func @transform_7(%arg0: i32, %arg1: i32) -> (i32, i32, i32) {
    %c0_i32 = arith.constant 0 : i32
    %c0_i32_0 = arith.constant 0 : i32
    %c0_i32_1 = arith.constant 0 : i32
    return %arg1, %c0_i32, %c0_i32_0 : i32, i32, i32
  }
  func.func @transform_8(%arg0: i32, %arg1: i32) -> (i32, i32, i32) {
    %c0_i32 = arith.constant 0 : i32
    %c0_i32_0 = arith.constant 0 : i32
    %c0_i32_1 = arith.constant 0 : i32
    return %arg1, %c0_i32, %c0_i32_0 : i32, i32, i32
  }
  func.func @transform_9(%arg0: i32, %arg1: i32) -> (i32, i32, i32) {
    %c0_i32 = arith.constant 0 : i32
    %c0_i32_0 = arith.constant 0 : i32
    %c0_i32_1 = arith.constant 0 : i32
    return %arg1, %c0_i32, %c0_i32_0 : i32, i32, i32
  }
  func.func @transform_10(%arg0: i32, %arg1: i32) -> (i32, i32, i32) {
    %c0_i32 = arith.constant 0 : i32
    %c0_i32_0 = arith.constant 0 : i32
    %c0_i32_1 = arith.constant 0 : i32
    return %arg1, %c0_i32, %c0_i32_0 : i32, i32, i32
  }
  func.func @transform_11(%arg0: i32, %arg1: i32) -> (i32, i32, i32) {
    %c0_i32 = arith.constant 0 : i32
    %c0_i32_0 = arith.constant 0 : i32
    %c0_i32_1 = arith.constant 0 : i32
    return %arg1, %c0_i32, %c0_i32_0 : i32, i32, i32
  }
  func.func @transform_12(%arg0: i32, %arg1: i32) -> (i32, i32, i32) {
    %c0_i32 = arith.constant 0 : i32
    %c0_i32_0 = arith.constant 0 : i32
    %c0_i32_1 = arith.constant 0 : i32
    return %arg1, %c0_i32, %c0_i32_0 : i32, i32, i32
  }
  func.func @transform_13(%arg0: i32, %arg1: i32) -> (i32, i32) {
    %c0_i32 = arith.constant 0 : i32
    %c0_i32_0 = arith.constant 0 : i32
    return %arg0, %c0_i32 : i32, i32
  }
  func.func @transform_14(%arg0: i32, %arg1: i32) -> (i32, i32) {
    %c0_i32 = arith.constant 0 : i32
    %c0_i32_0 = arith.constant 0 : i32
    return %arg0, %c0_i32 : i32, i32
  }
}

</mosaic_0001>

<llo_original>
// kernel: tpu_custom_call.1
$region0: #{tpu_custom_call.1}
  #allocation0 [shape = 'u32[]', space=smem, size = 0x4, offset = 0x4, fixed_abs, tag = 'smem constant byte address 0x4 - core index']
  #allocation1 [shape = 'u32[144,128]{1,0:T(1,128)}', space=vmem, size = 0x12000, scoped, tag = 'internal scratch']
  #allocation2 [shape = 'f32[8,32]{1,0:T(8,128)}', space=vmem, size = 0x1000, scoped, tag = 'scratch operand']
  %s0 = inlined_call_operand.hbm [shape: f32[2,8,32], index: 0, kind: input, shape index: {}]
  %s1 = inlined_call_operand.hbm [shape: bf16[2,8,32], index: 1, kind: input, shape index: {}]
  %s2 = inlined_call_operand.hbm [shape: bf16[2,8,32], index: 2, kind: input, shape index: {}]
  %s3 = inlined_call_operand.hbm [shape: bf16[2,32,32], index: 3, kind: input, shape index: {}]
  %s4 = inlined_call_operand.hbm [shape: bf16[2,32,32], index: 4, kind: input, shape index: {}]
  %s5 = inlined_call_operand.hbm [shape: bf16[2,32,32], index: 5, kind: input, shape index: {}]
  %s6 = inlined_call_operand.hbm [shape: bf16[2,32,32], index: 6, kind: input, shape index: {}]
  %s7 = inlined_call_operand.vmem [shape: f32[2,1,32], index: 7, kind: input, shape index: {}]
  %s8 = inlined_call_operand.vmem [shape: f32[2,1,32], index: 8, kind: input, shape index: {}]
  %s9 = inlined_call_operand.vmem [shape: f32[2,1,32], index: 9, kind: input, shape index: {}]
  %s10 = inlined_call_operand.vmem [shape: f32[2,1,32], index: 10, kind: input, shape index: {}]
  %s11 = inlined_call_operand.vmem [shape: f32[2,1,32], index: 11, kind: input, shape index: {}]
  %s12 = inlined_call_operand.vmem [shape: f32[2,1,32], index: 12, kind: input, shape index: {}]
  %s13 = inlined_call_operand.hbm [shape: f32[16,32], index: 13, kind: output, shape index: {0}]
  %s14 = inlined_call_operand.vmem [shape: f32[16,8], index: 14, kind: output, shape index: {1}]
  %15 = xla_tuple %s13, %s14
  %s16 = sld [smem:[#allocation0]]
  $region129: #{tpu_custom_call.1} parent=0
    _
  %s18 = ssub.s32 1, %s16
  %s19 = scalar_select 0, %s18, %s16
  $region1: #{tpu_custom_call.1} parent=0
    #allocation3 [shape = 'u8[8192]{0}', space=vmem, size = 0x2000, scoped, tag = 'input window, operand 0']
    #allocation4 [shape = 's32[2]{0}', space=sflag, size = 0x8, scoped, tag = 'scoped memory for tpu_custom_call.1']
    #allocation5 [shape = 's32[2]{0}', space=sflag, size = 0x8, scoped, tag = 'scoped memory for tpu_custom_call.1']
    #allocation6 [shape = 'u8[4096]{0}', space=vmem, size = 0x1000, scoped, tag = 'input window, operand 1']
    #allocation7 [shape = 's32[2]{0}', space=sflag, size = 0x8, scoped, tag = 'scoped memory for tpu_custom_call.1']
    #allocation8 [shape = 'u8[4096]{0}', space=vmem, size = 0x1000, scoped, tag = 'input window, operand 2']
    #allocation9 [shape = 'u8[16384]{0}', space=vmem, size = 0x4000, scoped, tag = 'input window, operand 3']
    #allocation10 [shape = 's32[2]{0}', space=sflag, size = 0x8, scoped, tag = 'scoped memory for tpu_custom_call.1']
    #allocation11 [shape = 'u8[16384]{0}', space=vmem, size = 0x4000, scoped, tag = 'input window, operand 4']
    #allocation12 [shape = 'u8[16384]{0}', space=vmem, size = 0x4000, scoped, tag = 'input window, operand 5']
    #allocation13 [shape = 's32[2]{0}', space=sflag, size = 0x8, scoped, tag = 'scoped memory for tpu_custom_call.1']
    #allocation14 [shape = 'u8[16384]{0}', space=vmem, size = 0x4000, scoped, tag = 'input window, operand 6']
    #allocation15 [shape = 'u8[8192]{0}', space=vmem, size = 0x2000, scoped, tag = 'output window, operand 0']
    %20 = vsyncpa [#allocation4], 0
    %s21 = scalar_lea.sflag [#allocation4], 1
    %22 = vsyncpa %s21, 0
    %23 = vsyncpa [#allocation7], 0
    %s24 = scalar_lea.sflag [#allocation7], 1
    %25 = vsyncpa %s24, 0
    %26 = vsyncpa [#allocation10], 0
    %s27 = scalar_lea.sflag [#allocation10], 1
    %28 = vsyncpa %s27, 0
    %29 = vsyncpa [#allocation13], 0
    %s30 = scalar_lea.sflag [#allocation13], 1
    %31 = vsyncpa %s30, 0
    %32 = vsyncpa [#allocation5], 0
    %s33 = scalar_lea.sflag [#allocation5], 1
    %34 = vsyncpa %s33, 0
    loop: start=0, step=1, limit=6
    $region2: #{tpu_custom_call.1} parent=1 // loop_pre_header
      _
    $region3: #{tpu_custom_call.1} parent=1 // loop_header
      %s36 = sphi 0, %s40
      %p37 = scmp.ge.s32.totalorder %s36, 6
      %s43 = sphi 0, %s55
      %s44 = sphi 0, %s51
      %s45 = sphi 0, %s43
      %s46 = sphi 0, %s44
      %s47 = sphi 0, %s45
      %s48 = sphi 0, %s46
      %s58 = sphi 0, %s60
      %s61 = sphi 0, %s58
      %s62 = sphi 0, %s61
      %s78 = sphi 0, %s62
      %s84 = sphi 0, %s86
      %s87 = sphi 0, %s84
      %s88 = sphi 0, %s87
      %s104 = sphi 0, %s88
      %s110 = sphi 0, %s112
      %s113 = sphi 0, %s110
      %s114 = sphi 0, %s113
      %s130 = sphi 0, %s114
      %s136 = sphi 0, %s138
      %s139 = sphi 0, %s136
      %s140 = sphi 0, %s139
      %s156 = sphi 0, %s140
      %s162 = sphi 0, %s164
      %s165 = sphi 0, %s162
      %s166 = sphi 0, %s165
      %s182 = sphi 0, %s166
      %s188 = sphi 0, %s190
      %s191 = sphi 0, %s188
      %s192 = sphi 0, %s191
      %s208 = sphi 0, %s192
      %s214 = sphi 0, %s216
      %s217 = sphi 0, %s214
      %s218 = sphi 0, %s217
      %s234 = sphi 0, %s218
      %s240 = sphi 0, %s242
      %s243 = sphi 0, %s240
      %s244 = sphi 0, %s243
      %s260 = sphi 0, %s244
      %s266 = sphi 0, %s268
      %s269 = sphi 0, %s266
      %s270 = sphi 0, %s269
      %s286 = sphi 0, %s270
      %s292 = sphi 0, %s294
      %s295 = sphi 0, %s292
      %s296 = sphi 0, %s295
      %s312 = sphi 0, %s296
      %s318 = sphi 0, %s320
      %s321 = sphi 0, %s318
      %s322 = sphi 0, %s321
      %s338 = sphi 0, %s322
      %s344 = sphi 0, %s346
      %s347 = sphi 0, %s344
      %s348 = sphi 0, %s347
      %s364 = sphi 0, %s348
      %s370 = sphi 0, %s372
      %s373 = sphi 0, %s370
      %s374 = sphi 0, %s373
      %s390 = sphi 0, %s374
      %s396 = sphi 0, %s398
      %s399 = sphi 0, %s396
      %s400 = sphi 0, %s399
      %s416 = sphi 0, %s400
      %s422 = sphi 0, %s424
      %s425 = sphi 0, %s422
      %s426 = sphi 0, %s425
      %s442 = sphi 0, %s426
    $region4: #{tpu_custom_call.1} parent=1 // loop_header_branch
      %39 = sbr.rel (%p37) target = $region8
    $region5: #{tpu_custom_call.1} parent=1 // loop_body
      %s41 = ssub.s32 %s36, 1
      %s42 = ssub.s32 %s36, 2
      %s49 = sadd.s32 1, %s44
      %p50 = scmp.ge.s32.totalorder %s49, 2
      %s51 = scalar_select %p50, 0, %s49
      %s52 = sadd.s32 1, %s43
      %s53 = scalar_select %p50, %s52, %s43
      %p54 = scmp.ge.s32.totalorder %s53, 2
      %s55 = scalar_select %p54, 0, %s53
      %s56 = ssub.s32 %s43, %s55
      %p57 = scmp.eq.s32.totalorder %s56, 0
      %s59 = sadd.s32 %s58, 1
      %s60 = scalar_select %p57, %s58, %s59
      %p63 = pneg %p57
      %p64 = scmp.eq.s32.totalorder %s36, 3
      %p65 = por %p63, %p64
      %p66 = scmp.ne.s32.totalorder %s58, %s61
      %p67 = scmp.eq.s32.totalorder %s36, 0
      %p68 = por %p66, %p67
      %p69 = scmp.ne.s32.totalorder %s58, %s61
      %p70 = scmp.eq.s32.totalorder %s41, 3
      %p71 = por %p69, %p70
      %p72 = scmp.ne.s32.totalorder %s61, %s62
      %p73 = scmp.eq.s32.totalorder %s41, 0
      %p74 = por %p72, %p73
      %p75 = scmp.ne.s32.totalorder %s61, %s62
      %p76 = scmp.eq.s32.totalorder %s42, 3
      %p77 = por %p75, %p76
      %p79 = scmp.ne.s32.totalorder %s62, %s78
      %p80 = scmp.eq.s32.totalorder %s42, 0
      %p81 = por %p79, %p80
      %s82 = ssub.s32 %s43, %s55
      %p83 = scmp.eq.s32.totalorder %s82, 0
      %s85 = sadd.s32 %s84, 1
      %s86 = scalar_select %p83, %s84, %s85
      %p89 = pneg %p83
      %p90 = scmp.eq.s32.totalorder %s36, 3
      %p91 = por %p89, %p90
      %p92 = scmp.ne.s32.totalorder %s84, %s87
      %p93 = scmp.eq.s32.totalorder %s36, 0
      %p94 = por %p92, %p93
      %p95 = scmp.ne.s32.totalorder %s84, %s87
      %p96 = scmp.eq.s32.totalorder %s41, 3
      %p97 = por %p95, %p96
      %p98 = scmp.ne.s32.totalorder %s87, %s88
      %p99 = scmp.eq.s32.totalorder %s41, 0
      %p100 = por %p98, %p99
      %p101 = scmp.ne.s32.totalorder %s87, %s88
      %p102 = scmp.eq.s32.totalorder %s42, 3
      %p103 = por %p101, %p102
      %p105 = scmp.ne.s32.totalorder %s88, %s104
      %p106 = scmp.eq.s32.totalorder %s42, 0
      %p107 = por %p105, %p106
      %s108 = ssub.s32 %s43, %s55
      %p109 = scmp.eq.s32.totalorder %s108, 0
      %s111 = sadd.s32 %s110, 1
      %s112 = scalar_select %p109, %s110, %s111
      %p115 = pneg %p109
      %p116 = scmp.eq.s32.totalorder %s36, 3
      %p117 = por %p115, %p116
      %p118 = scmp.ne.s32.totalorder %s110, %s113
      %p119 = scmp.eq.s32.totalorder %s36, 0
      %p120 = por %p118, %p119
      %p121 = scmp.ne.s32.totalorder %s110, %s113
      %p122 = scmp.eq.s32.totalorder %s41, 3
      %p123 = por %p121, %p122
      %p124 = scmp.ne.s32.totalorder %s113, %s114
      %p125 = scmp.eq.s32.totalorder %s41, 0
      %p126 = por %p124, %p125
      %p127 = scmp.ne.s32.totalorder %s113, %s114
      %p128 = scmp.eq.s32.totalorder %s42, 3
      %p129 = por %p127, %p128
      %p131 = scmp.ne.s32.totalorder %s114, %s130
      %p132 = scmp.eq.s32.totalorder %s42, 0
      %p133 = por %p131, %p132
      %s134 = ssub.s32 %s44, %s51
      %p135 = scmp.eq.s32.totalorder %s134, 0
      %s137 = sadd.s32 %s136, 1
      %s138 = scalar_select %p135, %s136, %s137
      %p141 = pneg %p135
      %p142 = scmp.eq.s32.totalorder %s36, 3
      %p143 = por %p141, %p142
      %p144 = scmp.ne.s32.totalorder %s136, %s139
      %p145 = scmp.eq.s32.totalorder %s36, 0
      %p146 = por %p144, %p145
      %p147 = scmp.ne.s32.totalorder %s136, %s139
      %p148 = scmp.eq.s32.totalorder %s41, 3
      %p149 = por %p147, %p148
      %p150 = scmp.ne.s32.totalorder %s139, %s140
      %p151 = scmp.eq.s32.totalorder %s41, 0
      %p152 = por %p150, %p151
      %p153 = scmp.ne.s32.totalorder %s139, %s140
      %p154 = scmp.eq.s32.totalorder %s42, 3
      %p155 = por %p153, %p154
      %p157 = scmp.ne.s32.totalorder %s140, %s156
      %p158 = scmp.eq.s32.totalorder %s42, 0
      %p159 = por %p157, %p158
      %s160 = ssub.s32 %s44, %s51
      %p161 = scmp.eq.s32.totalorder %s160, 0
      %s163 = sadd.s32 %s162, 1
      %s164 = scalar_select %p161, %s162, %s163
      %p167 = pneg %p161
      %p168 = scmp.eq.s32.totalorder %s36, 3
      %p169 = por %p167, %p168
      %p170 = scmp.ne.s32.totalorder %s162, %s165
      %p171 = scmp.eq.s32.totalorder %s36, 0
      %p172 = por %p170, %p171
      %p173 = scmp.ne.s32.totalorder %s162, %s165
      %p174 = scmp.eq.s32.totalorder %s41, 3
      %p175 = por %p173, %p174
      %p176 = scmp.ne.s32.totalorder %s165, %s166
      %p177 = scmp.eq.s32.totalorder %s41, 0
      %p178 = por %p176, %p177
      %p179 = scmp.ne.s32.totalorder %s165, %s166
      %p180 = scmp.eq.s32.totalorder %s42, 3
      %p181 = por %p179, %p180
      %p183 = scmp.ne.s32.totalorder %s166, %s182
      %p184 = scmp.eq.s32.totalorder %s42, 0
      %p185 = por %p183, %p184
      %s186 = ssub.s32 %s44, %s51
      %p187 = scmp.eq.s32.totalorder %s186, 0
      %s189 = sadd.s32 %s188, 1
      %s190 = scalar_select %p187, %s188, %s189
      %p193 = pneg %p187
      %p194 = scmp.eq.s32.totalorder %s36, 3
      %p195 = por %p193, %p194
      %p196 = scmp.ne.s32.totalorder %s188, %s191
      %p197 = scmp.eq.s32.totalorder %s36, 0
      %p198 = por %p196, %p197
      %p199 = scmp.ne.s32.totalorder %s188, %s191
      %p200 = scmp.eq.s32.totalorder %s41, 3
      %p201 = por %p199, %p200
      %p202 = scmp.ne.s32.totalorder %s191, %s192
      %p203 = scmp.eq.s32.totalorder %s41, 0
      %p204 = por %p202, %p203
      %p205 = scmp.ne.s32.totalorder %s191, %s192
      %p206 = scmp.eq.s32.totalorder %s42, 3
      %p207 = por %p205, %p206
      %p209 = scmp.ne.s32.totalorder %s192, %s208
      %p210 = scmp.eq.s32.totalorder %s42, 0
      %p211 = por %p209, %p210
      %s212 = ssub.s32 %s44, %s51
      %p213 = scmp.eq.s32.totalorder %s212, 0
      %s215 = sadd.s32 %s214, 1
      %s216 = scalar_select %p213, %s214, %s215
      %p219 = pneg %p213
      %p220 = scmp.eq.s32.totalorder %s36, 3
      %p221 = por %p219, %p220
      %p222 = scmp.ne.s32.totalorder %s214, %s217
      %p223 = scmp.eq.s32.totalorder %s36, 0
      %p224 = por %p222, %p223
      %p225 = scmp.ne.s32.totalorder %s214, %s217
      %p226 = scmp.eq.s32.totalorder %s41, 3
      %p227 = por %p225, %p226
      %p228 = scmp.ne.s32.totalorder %s217, %s218
      %p229 = scmp.eq.s32.totalorder %s41, 0
      %p230 = por %p228, %p229
      %p231 = scmp.ne.s32.totalorder %s217, %s218
      %p232 = scmp.eq.s32.totalorder %s42, 3
      %p233 = por %p231, %p232
      %p235 = scmp.ne.s32.totalorder %s218, %s234
      %p236 = scmp.eq.s32.totalorder %s42, 0
      %p237 = por %p235, %p236
      %s238 = ssub.s32 %s44, %s51
      %p239 = scmp.eq.s32.totalorder %s238, 0
      %s241 = sadd.s32 %s240, 1
      %s242 = scalar_select %p239, %s240, %s241
      %p245 = pneg %p239
      %p246 = scmp.eq.s32.totalorder %s36, 3
      %p247 = por %p245, %p246
      %p248 = scmp.ne.s32.totalorder %s240, %s243
      %p249 = scmp.eq.s32.totalorder %s36, 0
      %p250 = por %p248, %p249
      %p251 = scmp.ne.s32.totalorder %s240, %s243
      %p252 = scmp.eq.s32.totalorder %s41, 3
      %p253 = por %p251, %p252
      %p254 = scmp.ne.s32.totalorder %s243, %s244
      %p255 = scmp.eq.s32.totalorder %s41, 0
      %p256 = por %p254, %p255
      %p257 = scmp.ne.s32.totalorder %s243, %s244
      %p258 = scmp.eq.s32.totalorder %s42, 3
      %p259 = por %p257, %p258
      %p261 = scmp.ne.s32.totalorder %s244, %s260
      %p262 = scmp.eq.s32.totalorder %s42, 0
      %p263 = por %p261, %p262
      %s264 = ssub.s32 %s44, %s51
      %p265 = scmp.eq.s32.totalorder %s264, 0
      %s267 = sadd.s32 %s266, 1
      %s268 = scalar_select %p265, %s266, %s267
      %p271 = pneg %p265
      %p272 = scmp.eq.s32.totalorder %s36, 3
      %p273 = por %p271, %p272
      %p274 = scmp.ne.s32.totalorder %s266, %s269
      %p275 = scmp.eq.s32.totalorder %s36, 0
      %p276 = por %p274, %p275
      %p277 = scmp.ne.s32.totalorder %s266, %s269
      %p278 = scmp.eq.s32.totalorder %s41, 3
      %p279 = por %p277, %p278
      %p280 = scmp.ne.s32.totalorder %s269, %s270
      %p281 = scmp.eq.s32.totalorder %s41, 0
      %p282 = por %p280, %p281
      %p283 = scmp.ne.s32.totalorder %s269, %s270
      %p284 = scmp.eq.s32.totalorder %s42, 3
      %p285 = por %p283, %p284
      %p287 = scmp.ne.s32.totalorder %s270, %s286
      %p288 = scmp.eq.s32.totalorder %s42, 0
      %p289 = por %p287, %p288
      %s290 = ssub.s32 %s44, %s51
      %p291 = scmp.eq.s32.totalorder %s290, 0
      %s293 = sadd.s32 %s292, 1
      %s294 = scalar_select %p291, %s292, %s293
      %p297 = pneg %p291
      %p298 = scmp.eq.s32.totalorder %s36, 3
      %p299 = por %p297, %p298
      %p300 = scmp.ne.s32.totalorder %s292, %s295
      %p301 = scmp.eq.s32.totalorder %s36, 0
      %p302 = por %p300, %p301
      %p303 = scmp.ne.s32.totalorder %s292, %s295
      %p304 = scmp.eq.s32.totalorder %s41, 3
      %p305 = por %p303, %p304
      %p306 = scmp.ne.s32.totalorder %s295, %s296
      %p307 = scmp.eq.s32.totalorder %s41, 0
      %p308 = por %p306, %p307
      %p309 = scmp.ne.s32.totalorder %s295, %s296
      %p310 = scmp.eq.s32.totalorder %s42, 3
      %p311 = por %p309, %p310
      %p313 = scmp.ne.s32.totalorder %s296, %s312
      %p314 = scmp.eq.s32.totalorder %s42, 0
      %p315 = por %p313, %p314
      %s316 = ssub.s32 %s44, %s51
      %p317 = scmp.eq.s32.totalorder %s316, 0
      %s319 = sadd.s32 %s318, 1
      %s320 = scalar_select %p317, %s318, %s319
      %p323 = pneg %p317
      %p324 = scmp.eq.s32.totalorder %s36, 3
      %p325 = por %p323, %p324
      %p326 = scmp.ne.s32.totalorder %s318, %s321
      %p327 = scmp.eq.s32.totalorder %s36, 0
      %p328 = por %p326, %p327
      %p329 = scmp.ne.s32.totalorder %s318, %s321
      %p330 = scmp.eq.s32.totalorder %s41, 3
      %p331 = por %p329, %p330
      %p332 = scmp.ne.s32.totalorder %s321, %s322
      %p333 = scmp.eq.s32.totalorder %s41, 0
      %p334 = por %p332, %p333
      %p335 = scmp.ne.s32.totalorder %s321, %s322
      %p336 = scmp.eq.s32.totalorder %s42, 3
      %p337 = por %p335, %p336
      %p339 = scmp.ne.s32.totalorder %s322, %s338
      %p340 = scmp.eq.s32.totalorder %s42, 0
      %p341 = por %p339, %p340
      %s342 = ssub.s32 %s44, %s51
      %p343 = scmp.eq.s32.totalorder %s342, 0
      %s345 = sadd.s32 %s344, 1
      %s346 = scalar_select %p343, %s344, %s345
      %p349 = pneg %p343
      %p350 = scmp.eq.s32.totalorder %s36, 3
      %p351 = por %p349, %p350
      %p352 = scmp.ne.s32.totalorder %s344, %s347
      %p353 = scmp.eq.s32.totalorder %s36, 0
      %p354 = por %p352, %p353
      %p355 = scmp.ne.s32.totalorder %s344, %s347
      %p356 = scmp.eq.s32.totalorder %s41, 3
      %p357 = por %p355, %p356
      %p358 = scmp.ne.s32.totalorder %s347, %s348
      %p359 = scmp.eq.s32.totalorder %s41, 0
      %p360 = por %p358, %p359
      %p361 = scmp.ne.s32.totalorder %s347, %s348
      %p362 = scmp.eq.s32.totalorder %s42, 3
      %p363 = por %p361, %p362
      %p365 = scmp.ne.s32.totalorder %s348, %s364
      %p366 = scmp.eq.s32.totalorder %s42, 0
      %p367 = por %p365, %p366
      %s368 = ssub.s32 %s44, %s51
      %p369 = scmp.eq.s32.totalorder %s368, 0
      %s371 = sadd.s32 %s370, 1
      %s372 = scalar_select %p369, %s370, %s371
      %p375 = pneg %p369
      %p376 = scmp.eq.s32.totalorder %s36, 3
      %p377 = por %p375, %p376
      %p378 = scmp.ne.s32.totalorder %s370, %s373
      %p379 = scmp.eq.s32.totalorder %s36, 0
      %p380 = por %p378, %p379
      %p381 = scmp.ne.s32.totalorder %s370, %s373
      %p382 = scmp.eq.s32.totalorder %s41, 3
      %p383 = por %p381, %p382
      %p384 = scmp.ne.s32.totalorder %s373, %s374
      %p385 = scmp.eq.s32.totalorder %s41, 0
      %p386 = por %p384, %p385
      %p387 = scmp.ne.s32.totalorder %s373, %s374
      %p388 = scmp.eq.s32.totalorder %s42, 3
      %p389 = por %p387, %p388
      %p391 = scmp.ne.s32.totalorder %s374, %s390
      %p392 = scmp.eq.s32.totalorder %s42, 0
      %p393 = por %p391, %p392
      %s394 = ssub.s32 %s43, %s55
      %p395 = scmp.eq.s32.totalorder %s394, 0
      %s397 = sadd.s32 %s396, 1
      %s398 = scalar_select %p395, %s396, %s397
      %p401 = pneg %p395
      %p402 = scmp.eq.s32.totalorder %s36, 3
      %p403 = por %p401, %p402
      %p404 = scmp.ne.s32.totalorder %s396, %s399
      %p405 = scmp.eq.s32.totalorder %s36, 0
      %p406 = por %p404, %p405
      %p407 = scmp.ne.s32.totalorder %s396, %s399
      %p408 = scmp.eq.s32.totalorder %s41, 3
      %p409 = por %p407, %p408
      %p410 = scmp.ne.s32.totalorder %s399, %s400
      %p411 = scmp.eq.s32.totalorder %s41, 0
      %p412 = por %p410, %p411
      %p413 = scmp.ne.s32.totalorder %s399, %s400
      %p414 = scmp.eq.s32.totalorder %s42, 3
      %p415 = por %p413, %p414
      %p417 = scmp.ne.s32.totalorder %s400, %s416
      %p418 = scmp.eq.s32.totalorder %s42, 0
      %p419 = por %p417, %p418
      %s420 = ssub.s32 %s43, %s55
      %p421 = scmp.eq.s32.totalorder %s420, 0
      %s423 = sadd.s32 %s422, 1
      %s424 = scalar_select %p421, %s422, %s423
      %p427 = pneg %p421
      %p428 = scmp.eq.s32.totalorder %s36, 3
      %p429 = por %p427, %p428
      %p430 = scmp.ne.s32.totalorder %s422, %s425
      %p431 = scmp.eq.s32.totalorder %s36, 0
      %p432 = por %p430, %p431
      %p433 = scmp.ne.s32.totalorder %s422, %s425
      %p434 = scmp.eq.s32.totalorder %s41, 3
      %p435 = por %p433, %p434
      %p436 = scmp.ne.s32.totalorder %s425, %s426
      %p437 = scmp.eq.s32.totalorder %s41, 0
      %p438 = por %p436, %p437
      %p439 = scmp.ne.s32.totalorder %s425, %s426
      %p440 = scmp.eq.s32.totalorder %s42, 3
      %p441 = por %p439, %p440
      %p443 = scmp.ne.s32.totalorder %s426, %s442
      %p444 = scmp.eq.s32.totalorder %s42, 0
      %p445 = por %p443, %p444
      %p446 = scmp.le.s32.totalorder 1, %s36
      %p447 = scmp.lt.s32.totalorder %s36, 5
      %p448 = pnand %p446, %p447
      %p449 = pneg %p448
      // Predicated region
      $region9: #{tpu_custom_call.1} parent=5 // pred_check
        _
      $region10: #{tpu_custom_call.1} parent=5 // pred_check_branch
        %451 = sbr.rel (%p448) target = $region12
      $region11: #{tpu_custom_call.1} parent=5 // pred_region
        %s452 = ssub.s32 %s36, 1
      $region12: #{tpu_custom_call.1} parent=5 // pred_fallthru
        _
      %p453 = scmp.lt.s32.totalorder %s36, 4
      // Predicated region
      $region13: #{tpu_custom_call.1} parent=5 // pred_check
        %p454 = pneg %p453
      $region14: #{tpu_custom_call.1} parent=5 // pred_check_branch
        %456 = sbr.rel (%p454) target = $region16
      $region15: #{tpu_custom_call.1} parent=5 // pred_region
        // Predicated region
        $region17: #{tpu_custom_call.1} parent=15 // pred_check
          %p457 = pneg %p68
        $region18: #{tpu_custom_call.1} parent=15 // pred_check_branch
          %459 = sbr.rel (%p457) target = $region20
        $region19: #{tpu_custom_call.1} parent=15 // pred_region
          %s460 = sand.u32 %s58, 1
          %s461 = scalar_lea.sflag [#allocation4], %s460
          %s462 = sand.u32 %s58, 1
          %s463 = smul.addr %s462, 8
          %s464 = scalar_lea.vmem [#allocation3], %s463
          %s466 = ssub.s32 128, 128
          %467 = vsyncadd %s461, %s466
          %s468 = smul.addr %s43, 128
          %s469 = scalar_lea.hbm %s0, %s468
          %s471 = sshll.u32 %s464, 4
          %s472 = int_to_ptr.vmem [resolvable:$true] %s471
          %474 = dma.hbm_to_vmem [thread:$0]  %s469, 128, %s472, %s461
        $region20: #{tpu_custom_call.1} parent=15 // pred_fallthru
          _
        // Predicated region
        $region21: #{tpu_custom_call.1} parent=15 // pred_check
          %p475 = pneg %p94
        $region22: #{tpu_custom_call.1} parent=15 // pred_check_branch
          %477 = sbr.rel (%p475) target = $region24
        $region23: #{tpu_custom_call.1} parent=15 // pred_region
          %s478 = sand.u32 %s36, 1
          %s479 = scalar_lea.sflag [#allocation7], %s478
          %s480 = sand.u32 %s84, 1
          %s481 = smul.addr %s480, 4
          %s482 = scalar_lea.vmem [#allocation6], %s481
          %s484 = ssub.s32 64, 64
          %485 = vsyncadd %s479, %s484
          %s486 = smul.addr %s43, 64
          %s487 = scalar_lea.hbm %s1, %s486
          %s489 = sshll.u32 %s482, 4
          %s490 = int_to_ptr.vmem [resolvable:$true] %s489
          %492 = dma.hbm_to_vmem [thread:$0]  %s487, 64, %s490, %s479
        $region24: #{tpu_custom_call.1} parent=15 // pred_fallthru
          _
        // Predicated region
        $region25: #{tpu_custom_call.1} parent=15 // pred_check
          %p493 = pneg %p120
        $region26: #{tpu_custom_call.1} parent=15 // pred_check_branch
          %495 = sbr.rel (%p493) target = $region28
        $region27: #{tpu_custom_call.1} parent=15 // pred_region
          %s496 = sand.u32 %s36, 1
          %s497 = scalar_lea.sflag [#allocation7], %s496
          %s498 = sand.u32 %s110, 1
          %s499 = smul.addr %s498, 4
          %s500 = scalar_lea.vmem [#allocation8], %s499
          %s502 = ssub.s32 64, 64
          %503 = vsyncadd %s497, %s502
          %s504 = smul.addr %s43, 64
          %s505 = scalar_lea.hbm %s2, %s504
          %s507 = sshll.u32 %s500, 4
          %s508 = int_to_ptr.vmem [resolvable:$true] %s507
          %510 = dma.hbm_to_vmem [thread:$0]  %s505, 64, %s508, %s497
        $region28: #{tpu_custom_call.1} parent=15 // pred_fallthru
          _
        // Predicated region
        $region29: #{tpu_custom_call.1} parent=15 // pred_check
          %p511 = pneg %p146
        $region30: #{tpu_custom_call.1} parent=15 // pred_check_branch
          %513 = sbr.rel (%p511) target = $region32
        $region31: #{tpu_custom_call.1} parent=15 // pred_region
          %s514 = sand.u32 %s36, 1
          %s515 = scalar_lea.sflag [#allocation10], %s514
          %s516 = sand.u32 %s136, 1
          %s517 = smul.addr %s516, 16
          %s518 = scalar_lea.vmem [#allocation9], %s517
          %s520 = ssub.s32 256, 256
          %521 = vsyncadd %s515, %s520
          %s522 = smul.addr %s44, 4
          %s523 = smul.addr %s522, 64
          %s524 = scalar_lea.hbm %s3, %s523
          %s525 = sshll.u32 %s518, 4
          %s526 = int_to_ptr.vmem [resolvable:$true] %s525
          %531 = dma.hbm_to_vmem [thread:$0]  %s524, 256, %s526, %s515, 64, 64, 4
        $region32: #{tpu_custom_call.1} parent=15 // pred_fallthru
          _
        // Predicated region
        $region33: #{tpu_custom_call.1} parent=15 // pred_check
          %p532 = pneg %p172
        $region34: #{tpu_custom_call.1} parent=15 // pred_check_branch
          %534 = sbr.rel (%p532) target = $region36
        $region35: #{tpu_custom_call.1} parent=15 // pred_region
          %s535 = sand.u32 %s36, 1
          %s536 = scalar_lea.sflag [#allocation10], %s535
          %s537 = sand.u32 %s162, 1
          %s538 = smul.addr %s537, 16
          %s539 = scalar_lea.vmem [#allocation11], %s538
          %s541 = ssub.s32 256, 256
          %542 = vsyncadd %s536, %s541
          %s543 = smul.addr %s44, 4
          %s544 = smul.addr %s543, 64
          %s545 = scalar_lea.hbm %s4, %s544
          %s546 = sshll.u32 %s539, 4
          %s547 = int_to_ptr.vmem [resolvable:$true] %s546
          %552 = dma.hbm_to_vmem [thread:$0]  %s545, 256, %s547, %s536, 64, 64, 4
        $region36: #{tpu_custom_call.1} parent=15 // pred_fallthru
          _
        // Predicated region
        $region37: #{tpu_custom_call.1} parent=15 // pred_check
          %p553 = pneg %p198
        $region38: #{tpu_custom_call.1} parent=15 // pred_check_branch
          %555 = sbr.rel (%p553) target = $region40
        $region39: #{tpu_custom_call.1} parent=15 // pred_region
          %s556 = sand.u32 %s36, 1
          %s557 = scalar_lea.sflag [#allocation13], %s556
          %s558 = sand.u32 %s188, 1
          %s559 = smul.addr %s558, 16
          %s560 = scalar_lea.vmem [#allocation12], %s559
          %s562 = ssub.s32 256, 256
          %563 = vsyncadd %s557, %s562
          %s564 = smul.addr %s44, 4
          %s565 = smul.addr %s564, 64
          %s566 = scalar_lea.hbm %s5, %s565
          %s567 = sshll.u32 %s560, 4
          %s568 = int_to_ptr.vmem [resolvable:$true] %s567
          %573 = dma.hbm_to_vmem [thread:$0]  %s566, 256, %s568, %s557, 64, 64, 4
        $region40: #{tpu_custom_call.1} parent=15 // pred_fallthru
          _
        // Predicated region
        $region41: #{tpu_custom_call.1} parent=15 // pred_check
          %p574 = pneg %p224
        $region42: #{tpu_custom_call.1} parent=15 // pred_check_branch
          %576 = sbr.rel (%p574) target = $region44
        $region43: #{tpu_custom_call.1} parent=15 // pred_region
          %s577 = sand.u32 %s36, 1
          %s578 = scalar_lea.sflag [#allocation13], %s577
          %s579 = sand.u32 %s214, 1
          %s580 = smul.addr %s579, 16
          %s581 = scalar_lea.vmem [#allocation14], %s580
          %s583 = ssub.s32 256, 256
          %584 = vsyncadd %s578, %s583
          %s585 = smul.addr %s44, 4
          %s586 = smul.addr %s585, 64
          %s587 = scalar_lea.hbm %s6, %s586
          %s588 = sshll.u32 %s581, 4
          %s589 = int_to_ptr.vmem [resolvable:$true] %s588
          %594 = dma.hbm_to_vmem [thread:$0]  %s587, 256, %s589, %s578, 64, 64, 4
        $region44: #{tpu_custom_call.1} parent=15 // pred_fallthru
          _
        // Predicated region
        $region45: #{tpu_custom_call.1} parent=15 // pred_check
          %p595 = pneg %p250
        $region46: #{tpu_custom_call.1} parent=15 // pred_check_branch
          %597 = sbr.rel (%p595) target = $region48
        $region47: #{tpu_custom_call.1} parent=15 // pred_region
          %p598 = scmp.lt.s32.totalorder %s44, 1
          %s599 = scalar_select %p598, %s44, 1
          %s600 = scalar_lea.vmem %s7, %s599
        $region48: #{tpu_custom_call.1} parent=15 // pred_fallthru
          _
        // Predicated region
        $region49: #{tpu_custom_call.1} parent=15 // pred_check
          %p601 = pneg %p276
        $region50: #{tpu_custom_call.1} parent=15 // pred_check_branch
          %603 = sbr.rel (%p601) target = $region52
        $region51: #{tpu_custom_call.1} parent=15 // pred_region
          %p604 = scmp.lt.s32.totalorder %s44, 1
          %s605 = scalar_select %p604, %s44, 1
          %s606 = scalar_lea.vmem %s8, %s605
        $region52: #{tpu_custom_call.1} parent=15 // pred_fallthru
          _
        // Predicated region
        $region53: #{tpu_custom_call.1} parent=15 // pred_check
          %p607 = pneg %p302
        $region54: #{tpu_custom_call.1} parent=15 // pred_check_branch
          %609 = sbr.rel (%p607) target = $region56
        $region55: #{tpu_custom_call.1} parent=15 // pred_region
          %p610 = scmp.lt.s32.totalorder %s44, 1
          %s611 = scalar_select %p610, %s44, 1
          %s612 = scalar_lea.vmem %s9, %s611
        $region56: #{tpu_custom_call.1} parent=15 // pred_fallthru
          _
        // Predicated region
        $region57: #{tpu_custom_call.1} parent=15 // pred_check
          %p613 = pneg %p328
        $region58: #{tpu_custom_call.1} parent=15 // pred_check_branch
          %615 = sbr.rel (%p613) target = $region60
        $region59: #{tpu_custom_call.1} parent=15 // pred_region
          %p616 = scmp.lt.s32.totalorder %s44, 1
          %s617 = scalar_select %p616, %s44, 1
          %s618 = scalar_lea.vmem %s10, %s617
        $region60: #{tpu_custom_call.1} parent=15 // pred_fallthru
          _
        // Predicated region
        $region61: #{tpu_custom_call.1} parent=15 // pred_check
          %p619 = pneg %p354
        $region62: #{tpu_custom_call.1} parent=15 // pred_check_branch
          %621 = sbr.rel (%p619) target = $region64
        $region63: #{tpu_custom_call.1} parent=15 // pred_region
          %p622 = scmp.lt.s32.totalorder %s44, 1
          %s623 = scalar_select %p622, %s44, 1
          %s624 = scalar_lea.vmem %s11, %s623
        $region64: #{tpu_custom_call.1} parent=15 // pred_fallthru
          _
        // Predicated region
        $region65: #{tpu_custom_call.1} parent=15 // pred_check
          %p625 = pneg %p380
        $region66: #{tpu_custom_call.1} parent=15 // pred_check_branch
          %627 = sbr.rel (%p625) target = $region68
        $region67: #{tpu_custom_call.1} parent=15 // pred_region
          %p628 = scmp.lt.s32.totalorder %s44, 1
          %s629 = scalar_select %p628, %s44, 1
          %s630 = scalar_lea.vmem %s12, %s629
        $region68: #{tpu_custom_call.1} parent=15 // pred_fallthru
          _
      $region16: #{tpu_custom_call.1} parent=5 // pred_fallthru
        _
      %p631 = scmp.le.s32.totalorder 1, %s36
      %p632 = scmp.lt.s32.totalorder %s36, 5
      %p633 = pnand %p631, %p632
      %p634 = pneg %p633
      // Predicated region
      $region69: #{tpu_custom_call.1} parent=5 // pred_check
        _
      $region70: #{tpu_custom_call.1} parent=5 // pred_check_branch
        %636 = sbr.rel (%p633) target = $region72
      $region71: #{tpu_custom_call.1} parent=5 // pred_region
        %s637 = ssub.s32 %s36, 1
        %s638 = sand.u32 %s61, 1
        %s639 = scalar_lea.sflag [#allocation4], %s638
        %s640 = sand.u32 %s61, 1
        %s641 = smul.addr %s640, 8
        %s642 = scalar_lea.vmem [#allocation3], %s641
        // Predicated region
        $region73: #{tpu_custom_call.1} parent=71 // pred_check
          %p643 = pneg %p74
        $region74: #{tpu_custom_call.1} parent=71 // pred_check_branch
          %645 = sbr.rel (%p643) target = $region76
        $region75: #{tpu_custom_call.1} parent=71 // pred_region
          %646 = dma.done %s639, 128
        $region76: #{tpu_custom_call.1} parent=71 // pred_fallthru
          _
        %s647 = sand.u32 %s41, 1
        %s648 = scalar_lea.sflag [#allocation7], %s647
        %s649 = sand.u32 %s87, 1
        %s650 = smul.addr %s649, 4
        %s651 = scalar_lea.vmem [#allocation6], %s650
        // Predicated region
        $region77: #{tpu_custom_call.1} parent=71 // pred_check
          %p652 = pneg %p100
        $region78: #{tpu_custom_call.1} parent=71 // pred_check_branch
          %654 = sbr.rel (%p652) target = $region80
        $region79: #{tpu_custom_call.1} parent=71 // pred_region
          %655 = dma.done %s648, 64
        $region80: #{tpu_custom_call.1} parent=71 // pred_fallthru
          _
        %s656 = sand.u32 %s41, 1
        %s657 = scalar_lea.sflag [#allocation7], %s656
        %s658 = sand.u32 %s113, 1
        %s659 = smul.addr %s658, 4
        %s660 = scalar_lea.vmem [#allocation8], %s659
        // Predicated region
        $region81: #{tpu_custom_call.1} parent=71 // pred_check
          %p661 = pneg %p126
        $region82: #{tpu_custom_call.1} parent=71 // pred_check_branch
          %663 = sbr.rel (%p661) target = $region84
        $region83: #{tpu_custom_call.1} parent=71 // pred_region
          %664 = dma.done %s657, 64
        $region84: #{tpu_custom_call.1} parent=71 // pred_fallthru
          _
        %s665 = sand.u32 %s41, 1
        %s666 = scalar_lea.sflag [#allocation10], %s665
        %s667 = sand.u32 %s139, 1
        %s668 = smul.addr %s667, 16
        %s669 = scalar_lea.vmem [#allocation9], %s668
        // Predicated region
        $region85: #{tpu_custom_call.1} parent=71 // pred_check
          %p670 = pneg %p152
        $region86: #{tpu_custom_call.1} parent=71 // pred_check_branch
          %672 = sbr.rel (%p670) target = $region88
        $region87: #{tpu_custom_call.1} parent=71 // pred_region
          %673 = dma.done %s666, 256
        $region88: #{tpu_custom_call.1} parent=71 // pred_fallthru
          _
        %s674 = sand.u32 %s41, 1
        %s675 = scalar_lea.sflag [#allocation10], %s674
        %s676 = sand.u32 %s165, 1
        %s677 = smul.addr %s676, 16
        %s678 = scalar_lea.vmem [#allocation11], %s677
        // Predicated region
        $region89: #{tpu_custom_call.1} parent=71 // pred_check
          %p679 = pneg %p178
        $region90: #{tpu_custom_call.1} parent=71 // pred_check_branch
          %681 = sbr.rel (%p679) target = $region92
        $region91: #{tpu_custom_call.1} parent=71 // pred_region
          %682 = dma.done %s675, 256
        $region92: #{tpu_custom_call.1} parent=71 // pred_fallthru
          _
        %s683 = sand.u32 %s41, 1
        %s684 = scalar_lea.sflag [#allocation13], %s683
        %s685 = sand.u32 %s191, 1
        %s686 = smul.addr %s685, 16
        %s687 = scalar_lea.vmem [#allocation12], %s686
        // Predicated region
        $region93: #{tpu_custom_call.1} parent=71 // pred_check
          %p688 = pneg %p204
        $region94: #{tpu_custom_call.1} parent=71 // pred_check_branch
          %690 = sbr.rel (%p688) target = $region96
        $region95: #{tpu_custom_call.1} parent=71 // pred_region
          %691 = dma.done %s684, 256
        $region96: #{tpu_custom_call.1} parent=71 // pred_fallthru
          _
        %s692 = sand.u32 %s41, 1
        %s693 = scalar_lea.sflag [#allocation13], %s692
        %s694 = sand.u32 %s217, 1
        %s695 = smul.addr %s694, 16
        %s696 = scalar_lea.vmem [#allocation14], %s695
        // Predicated region
        $region97: #{tpu_custom_call.1} parent=71 // pred_check
          %p697 = pneg %p230
        $region98: #{tpu_custom_call.1} parent=71 // pred_check_branch
          %699 = sbr.rel (%p697) target = $region100
        $region99: #{tpu_custom_call.1} parent=71 // pred_region
          %700 = dma.done %s693, 256
        $region100: #{tpu_custom_call.1} parent=71 // pred_fallthru
          _
        %s701 = sand.u32 %s61, 1
        %s702 = scalar_lea.sflag [#allocation4], %s701
        %s703 = sand.u32 %s61, 1
        %s704 = smul.addr %s703, 8
        %s705 = scalar_lea.vmem [#allocation3], %s704
        %p706 = pneg %p74
        %p707 = pneg %p71
        %s708 = sand.u32 %s41, 1
        %s709 = scalar_lea.sflag [#allocation7], %s708
        %s710 = sand.u32 %s87, 1
        %s711 = smul.addr %s710, 4
        %s712 = scalar_lea.vmem [#allocation6], %s711
        %p713 = pneg %p100
        %p714 = pneg %p97
        %s715 = sand.u32 %s41, 1
        %s716 = scalar_lea.sflag [#allocation7], %s715
        %s717 = sand.u32 %s113, 1
        %s718 = smul.addr %s717, 4
        %s719 = scalar_lea.vmem [#allocation8], %s718
        %p720 = pneg %p126
        %p721 = pneg %p123
        %s722 = sand.u32 %s41, 1
        %s723 = scalar_lea.sflag [#allocation10], %s722
        %s724 = sand.u32 %s139, 1
        %s725 = smul.addr %s724, 16
        %s726 = scalar_lea.vmem [#allocation9], %s725
        %p727 = pneg %p152
        %p728 = pneg %p149
        %s729 = sand.u32 %s41, 1
        %s730 = scalar_lea.sflag [#allocation10], %s729
        %s731 = sand.u32 %s165, 1
        %s732 = smul.addr %s731, 16
        %s733 = scalar_lea.vmem [#allocation11], %s732
        %p734 = pneg %p178
        %p735 = pneg %p175
        %s736 = sand.u32 %s41, 1
        %s737 = scalar_lea.sflag [#allocation13], %s736
        %s738 = sand.u32 %s191, 1
        %s739 = smul.addr %s738, 16
        %s740 = scalar_lea.vmem [#allocation12], %s739
        %p741 = pneg %p204
        %p742 = pneg %p201
        %s743 = sand.u32 %s41, 1
        %s744 = scalar_lea.sflag [#allocation13], %s743
        %s745 = sand.u32 %s217, 1
        %s746 = smul.addr %s745, 16
        %s747 = scalar_lea.vmem [#allocation14], %s746
        %p748 = pneg %p230
        %p749 = pneg %p227
        %p750 = scmp.lt.s32.totalorder %s46, 1
        %s751 = scalar_select %p750, %s46, 1
        %s752 = scalar_lea.vmem %s7, %s751
        %p753 = pneg %p256
        %p754 = pneg %p253
        %p755 = scmp.lt.s32.totalorder %s46, 1
        %s756 = scalar_select %p755, %s46, 1
        %s757 = scalar_lea.vmem %s8, %s756
        %p758 = pneg %p282
        %p759 = pneg %p279
        %p760 = scmp.lt.s32.totalorder %s46, 1
        %s761 = scalar_select %p760, %s46, 1
        %s762 = scalar_lea.vmem %s9, %s761
        %p763 = pneg %p308
        %p764 = pneg %p305
        %p765 = scmp.lt.s32.totalorder %s46, 1
        %s766 = scalar_select %p765, %s46, 1
        %s767 = scalar_lea.vmem %s10, %s766
        %p768 = pneg %p334
        %p769 = pneg %p331
        %p770 = scmp.lt.s32.totalorder %s46, 1
        %s771 = scalar_select %p770, %s46, 1
        %s772 = scalar_lea.vmem %s11, %s771
        %p773 = pneg %p360
        %p774 = pneg %p357
        %p775 = scmp.lt.s32.totalorder %s46, 1
        %s776 = scalar_select %p775, %s46, 1
        %s777 = scalar_lea.vmem %s12, %s776
        %p778 = pneg %p386
        %p779 = pneg %p383
        %p780 = pneg %p412
        %p781 = pneg %p409
        %s782 = sand.u32 %s399, 1
        %s783 = scalar_lea.sflag [#allocation5], %s782
        %s784 = sand.u32 %s399, 1
        %s785 = smul.addr %s784, 8
        %s786 = scalar_lea.vmem [#allocation15], %s785
        %p787 = pneg %p438
        %p788 = pneg %p435
        %p789 = scmp.lt.s32.totalorder %s45, 1
        %s790 = scalar_select %p789, %s45, 1
        %s791 = smul.addr %s790, 8
        %s792 = scalar_lea.vmem %s14, %s791
        %p793 = scmp.lt.s32.totalorder %s46, 1
        %s794 = scalar_select %p793, %s46, 1
        %s795 = scalar_lea.vmem %s7, %s794
        %p796 = scmp.lt.s32.totalorder %s46, 1
        %s797 = scalar_select %p796, %s46, 1
        %s798 = scalar_lea.vmem %s8, %s797
        %p799 = scmp.lt.s32.totalorder %s46, 1
        %s800 = scalar_select %p799, %s46, 1
        %s801 = scalar_lea.vmem %s9, %s800
        %p802 = scmp.lt.s32.totalorder %s46, 1
        %s803 = scalar_select %p802, %s46, 1
        %s804 = scalar_lea.vmem %s10, %s803
        %p805 = scmp.lt.s32.totalorder %s46, 1
        %s806 = scalar_select %p805, %s46, 1
        %s807 = scalar_lea.vmem %s11, %s806
        %p808 = scmp.lt.s32.totalorder %s46, 1
        %s809 = scalar_select %p808, %s46, 1
        %s810 = scalar_lea.vmem %s12, %s809
        %p811 = scmp.lt.s32.totalorder %s45, 1
        %s812 = scalar_select %p811, %s45, 1
        %s813 = smul.addr %s812, 8
        %s814 = scalar_lea.vmem %s14, %s813
        %p816 = scmp.eq.s32.totalorder %s46, 0
        // Predicated region
        $region101: #{tpu_custom_call.1} parent=71 // pred_check
          %p817 = pneg %p816
        $region102: #{tpu_custom_call.1} parent=71 // pred_check_branch
          %819 = sbr.rel (%p817) target = $region104
        $region103: #{tpu_custom_call.1} parent=71 // pred_region
          %v820 = vld [vmem:[%s642] sm:$0xff]
          %vm821 = vcmask 261120
          %822 = vst.msk [vmem:[#allocation2] sm:$0xff] %vm821, %v820
        $region104: #{tpu_custom_call.1} parent=71 // pred_fallthru
          _
        %v823 = vld [vmem:[#allocation2] sm:$0xff]
        %v824 = vpack.c.bf16 %v823, %v823
        %v825 = vld [vmem:[%s669] sm:$0xf]
        %v826 = vld [vmem:[%s669 + $0x4] sm:$0xf]
        %v827 = vld [vmem:[%s669 + $0x8] sm:$0xf]
        %v828 = vld [vmem:[%s669 + $0xc] sm:$0xf]
        %v829 = vld [vmem:[%s795] sm:$0x1]
        %v831 = vlaneseq
        %v832 = vshrl.u32 %v831, 7
        %v833 = vsub.s32 0, %v832
        %v834 = vrot.slane %v829, %v833
        %v840 = vunpack.c.l.b16 %v825
        %v841 = vunpack.c.l.b16 %v826
        %v842 = vunpack.c.l.b16 %v827
        %v843 = vunpack.c.l.b16 %v828
        %v844 = vpack.c.b16 %v841, %v840
        %v845 = vpack.c.b16 %v843, %v842
        %vm848 = vcmask 261120
        %v850 = vsel %vm848, %v824, 0
        %852 = vmatprep.subr.bf16.mxu0 0
        %853 = vmatpush1.bf16.msra.mxu0 %v844
        %854 = vmatprep.subr.bf16.mxu0 0
        %855 = vmatpush1.bf16.msra.mxu0 %v845
        %856 = vmatprep.subr.bf16.mxu0 0
        %857 = vmatpush1.bf16.msra.mxu0 0
        %858 = vmatprep.subr.bf16.mxu0 0
        %859 = vmatpush1.bf16.msra.mxu0 0
        %860 = vmatprep.subr.bf16.mxu0 0
        %861 = vmatpush1.bf16.msra.mxu0 0
        %862 = vmatprep.subr.bf16.mxu0 0
        %863 = vmatpush1.bf16.msra.mxu0 0
        %864 = vmatprep.subr.bf16.mxu0 0
        %865 = vmatpush1.bf16.msra.mxu0 0
        %866 = vmatprep.subr.bf16.mxu0 0
        %867 = vmatpush1.bf16.msra.mxu0 0
        %868 = vmatprep.subr.bf16.mxu0 0
        %869 = vmatpush1.bf16.msra.mxu0 0
        %870 = vmatprep.subr.bf16.mxu0 0
        %871 = vmatpush1.bf16.msra.mxu0 0
        %872 = vmatprep.subr.bf16.mxu0 0
        %873 = vmatpush1.bf16.msra.mxu0 0
        %874 = vmatprep.subr.bf16.mxu0 0
        %875 = vmatpush1.bf16.msra.mxu0 0
        %876 = vmatprep.subr.bf16.mxu0 0
        %877 = vmatpush1.bf16.msra.mxu0 0
        %878 = vmatprep.subr.bf16.mxu0 0
        %879 = vmatpush1.bf16.msra.mxu0 0
        %880 = vmatprep.subr.bf16.mxu0 0
        %881 = vmatpush1.bf16.msra.mxu0 0
        %882 = vmatprep.subr.bf16.mxu0 0
        %883 = vmatpush1.bf16.msra.mxu0 0
        %884 = vmatprep.mubr.bf16.mxu0 0
        %885 = vmatmul.mubr.bf16.gmra.mrb[0].mxu0 %v850
        %v886 = vpop.f32.mrb[0].mxu0
        %v887 = vadd.f32 %v834, %v886
        %v888 = vpop.f32.mrb[0].mxu0
        %v889 = vpop.f32.mrb[0].mxu0
        %v890 = vpop.f32.mrb[0].mxu0
        %891 = vdwg.mxu0
        %v892 = vld [vmem:[%s651] sm:$0xf]
        %v893 = vld [vmem:[%s678] sm:$0xf]
        %v894 = vld [vmem:[%s678 + $0x4] sm:$0xf]
        %v895 = vld [vmem:[%s678 + $0x8] sm:$0xf]
        %v896 = vld [vmem:[%s678 + $0xc] sm:$0xf]
        %v897 = vld [vmem:[%s798] sm:$0x1]
        %v899 = vlaneseq
        %v900 = vshrl.u32 %v899, 7
        %v901 = vsub.s32 0, %v900
        %v902 = vrot.slane %v897, %v901
        %v908 = vunpack.c.l.b16 %v893
        %v909 = vunpack.c.l.b16 %v894
        %v910 = vunpack.c.l.b16 %v895
        %v911 = vunpack.c.l.b16 %v896
        %v912 = vpack.c.b16 %v909, %v908
        %v913 = vpack.c.b16 %v911, %v910
        %v917 = vsel %vm848, %v892, 0
        %919 = vmatprep.subr.bf16.mxu0 0
        %920 = vmatpush1.bf16.msra.mxu0 %v912
        %921 = vmatprep.subr.bf16.mxu0 0
        %922 = vmatpush1.bf16.msra.mxu0 %v913
        %923 = vmatprep.subr.bf16.mxu0 0
        %924 = vmatpush1.bf16.msra.mxu0 0
        %925 = vmatprep.subr.bf16.mxu0 0
        %926 = vmatpush1.bf16.msra.mxu0 0
        %927 = vmatprep.subr.bf16.mxu0 0
        %928 = vmatpush1.bf16.msra.mxu0 0
        %929 = vmatprep.subr.bf16.mxu0 0
        %930 = vmatpush1.bf16.msra.mxu0 0
        %931 = vmatprep.subr.bf16.mxu0 0
        %932 = vmatpush1.bf16.msra.mxu0 0
        %933 = vmatprep.subr.bf16.mxu0 0
        %934 = vmatpush1.bf16.msra.mxu0 0
        %935 = vmatprep.subr.bf16.mxu0 0
        %936 = vmatpush1.bf16.msra.mxu0 0
        %937 = vmatprep.subr.bf16.mxu0 0
        %938 = vmatpush1.bf16.msra.mxu0 0
        %939 = vmatprep.subr.bf16.mxu0 0
        %940 = vmatpush1.bf16.msra.mxu0 0
        %941 = vmatprep.subr.bf16.mxu0 0
        %942 = vmatpush1.bf16.msra.mxu0 0
        %943 = vmatprep.subr.bf16.mxu0 0
        %944 = vmatpush1.bf16.msra.mxu0 0
        %945 = vmatprep.subr.bf16.mxu0 0
        %946 = vmatpush1.bf16.msra.mxu0 0
        %947 = vmatprep.subr.bf16.mxu0 0
        %948 = vmatpush1.bf16.msra.mxu0 0
        %949 = vmatprep.subr.bf16.mxu0 0
        %950 = vmatpush1.bf16.msra.mxu0 0
        %951 = vmatprep.mubr.bf16.mxu0 0
        %952 = vmatmul.mubr.bf16.gmra.mrb[0].mxu0 %v917
        %v953 = vpop.f32.mrb[0].mxu0
        %v954 = vadd.f32 %v902, %v953
        %v955 = vpop.f32.mrb[0].mxu0
        %v956 = vpop.f32.mrb[0].mxu0
        %v957 = vpop.f32.mrb[0].mxu0
        %958 = vdwg.mxu0
        %v959 = vld [vmem:[%s660] sm:$0xf]
        %v960 = vld [vmem:[%s687] sm:$0xf]
        %v961 = vld [vmem:[%s687 + $0x4] sm:$0xf]
        %v962 = vld [vmem:[%s687 + $0x8] sm:$0xf]
        %v963 = vld [vmem:[%s687 + $0xc] sm:$0xf]
        %v964 = vld [vmem:[%s801] sm:$0x1]
        %v966 = vlaneseq
        %v967 = vshrl.u32 %v966, 7
        %v968 = vsub.s32 0, %v967
        %v969 = vrot.slane %v964, %v968
        %v975 = vunpack.c.l.b16 %v960
        %v976 = vunpack.c.l.b16 %v961
        %v977 = vunpack.c.l.b16 %v962
        %v978 = vunpack.c.l.b16 %v963
        %v979 = vpack.c.b16 %v976, %v975
        %v980 = vpack.c.b16 %v978, %v977
        %v984 = vsel %vm848, %v959, 0
        %986 = vmatprep.subr.bf16.mxu0 0
        %987 = vmatpush1.bf16.msra.mxu0 %v979
        %988 = vmatprep.subr.bf16.mxu0 0
        %989 = vmatpush1.bf16.msra.mxu0 %v980
        %990 = vmatprep.subr.bf16.mxu0 0
        %991 = vmatpush1.bf16.msra.mxu0 0
        %992 = vmatprep.subr.bf16.mxu0 0
        %993 = vmatpush1.bf16.msra.mxu0 0
        %994 = vmatprep.subr.bf16.mxu0 0
        %995 = vmatpush1.bf16.msra.mxu0 0
        %996 = vmatprep.subr.bf16.mxu0 0
        %997 = vmatpush1.bf16.msra.mxu0 0
        %998 = vmatprep.subr.bf16.mxu0 0
        %999 = vmatpush1.bf16.msra.mxu0 0
        %1000 = vmatprep.subr.bf16.mxu0 0
        %1001 = vmatpush1.bf16.msra.mxu0 0
        %1002 = vmatprep.subr.bf16.mxu0 0
        %1003 = vmatpush1.bf16.msra.mxu0 0
        %1004 = vmatprep.subr.bf16.mxu0 0
        %1005 = vmatpush1.bf16.msra.mxu0 0
        %1006 = vmatprep.subr.bf16.mxu0 0
        %1007 = vmatpush1.bf16.msra.mxu0 0
        %1008 = vmatprep.subr.bf16.mxu0 0
        %1009 = vmatpush1.bf16.msra.mxu0 0
        %1010 = vmatprep.subr.bf16.mxu0 0
        %1011 = vmatpush1.bf16.msra.mxu0 0
        %1012 = vmatprep.subr.bf16.mxu0 0
        %1013 = vmatpush1.bf16.msra.mxu0 0
        %1014 = vmatprep.subr.bf16.mxu0 0
        %1015 = vmatpush1.bf16.msra.mxu0 0
        %1016 = vmatprep.subr.bf16.mxu0 0
        %1017 = vmatpush1.bf16.msra.mxu0 0
        %1018 = vmatprep.mubr.bf16.mxu0 0
        %1019 = vmatmul.mubr.bf16.gmra.mrb[0].mxu0 %v984
        %v1020 = vpop.f32.mrb[0].mxu0
        %v1021 = vadd.f32 %v969, %v1020
        %v1022 = vpop.f32.mrb[0].mxu0
        %v1023 = vpop.f32.mrb[0].mxu0
        %v1024 = vpop.f32.mrb[0].mxu0
        %1025 = vdwg.mxu0
        %v1026 = vpack.c.bf16 %v887, %v887
        %v1027 = vpack.c.bf16 %v954, %v954
        %v1028 = vpack.c.bf16 %v1021, %v1021
        %v1029 = vld [vmem:[%s696] sm:$0xf]
        %v1030 = vld [vmem:[%s696 + $0x4] sm:$0xf]
        %v1031 = vld [vmem:[%s696 + $0x8] sm:$0xf]
        %v1032 = vld [vmem:[%s696 + $0xc] sm:$0xf]
        %vm1033 = vcmask 64512
        %v1035 = vsel %vm1033, %v1026, 0
        %v1038 = vsel %vm1033, %v1027, 0
        %1040 = vmatprep.subr.bf16.mxu0 0
        %1041 = vmatpush1.bf16.xpose.msra.mxu0 %v1038
        %1042 = vmatprep.subr.bf16.mxu0 0
        %1043 = vmatpush1.bf16.xpose.msra.mxu0 0
        %1044 = vmatprep.subr.bf16.mxu0 0
        %1045 = vmatpush1.bf16.xpose.msra.mxu0 0
        %1046 = vmatprep.subr.bf16.mxu0 0
        %1047 = vmatpush1.bf16.xpose.msra.mxu0 0
        %1048 = vmatprep.subr.bf16.mxu0 0
        %1049 = vmatpush1.bf16.xpose.msra.mxu0 0
        %1050 = vmatprep.subr.bf16.mxu0 0
        %1051 = vmatpush1.bf16.xpose.msra.mxu0 0
        %1052 = vmatprep.subr.bf16.mxu0 0
        %1053 = vmatpush1.bf16.xpose.msra.mxu0 0
        %1054 = vmatprep.subr.bf16.mxu0 0
        %1055 = vmatpush1.bf16.xpose.msra.mxu0 0
        %1056 = vmatprep.subr.bf16.mxu0 0
        %1057 = vmatpush1.bf16.xpose.msra.mxu0 0
        %1058 = vmatprep.subr.bf16.mxu0 0
        %1059 = vmatpush1.bf16.xpose.msra.mxu0 0
        %1060 = vmatprep.subr.bf16.mxu0 0
        %1061 = vmatpush1.bf16.xpose.msra.mxu0 0
        %1062 = vmatprep.subr.bf16.mxu0 0
        %1063 = vmatpush1.bf16.xpose.msra.mxu0 0
        %1064 = vmatprep.subr.bf16.mxu0 0
        %1065 = vmatpush1.bf16.xpose.msra.mxu0 0
        %1066 = vmatprep.subr.bf16.mxu0 0
        %1067 = vmatpush1.bf16.xpose.msra.mxu0 0
        %1068 = vmatprep.subr.bf16.mxu0 0
        %1069 = vmatpush1.bf16.xpose.msra.mxu0 0
        %1070 = vmatprep.subr.bf16.mxu0 0
        %1071 = vmatpush1.bf16.xpose.msra.mxu0 0
        %1072 = vmatprep.mubr.bf16.mxu0 0
        %1073 = vmatmul.mubr.bf16.gmra.mrb[0].mxu0 %v1035
        %v1074 = vpop.f32.mrb[0].mxu0
        %v1075 = vadd.f32 0.0, %v1074
        %v1076 = vpop.f32.mrb[0].mxu0
        %v1077 = vpop.f32.mrb[0].mxu0
        %v1078 = vpop.f32.mrb[0].mxu0
        %1079 = vdwg.mxu0
        %v1080 = vsel %vm1033, %v1075, -inf
        %1081 = vmax.xlane.f32.xlu0 %v1080
        %v1082 = vpop.xlane.xlu0 %1081
        %v1083 = vsub.f32 %v1075, %v1082
        %v1084 = vmul.f32 %v1083, 1.442695
        %v1085 = vpow.pop %v1084
        %v1086 = vsel %vm1033, %v1085, 0.0
        %1087 = vadd.xlane.f32.xlu0 %v1086
        %v1088 = vpop.xlane.xlu0 %1087
        %v1089 = vrcp.pop %v1088
        %v1090 = vmul.f32 %v1088, %v1089
        %v1091 = vsub.f32 2.0, %v1090
        %v1092 = vmul.f32 %v1089, %v1091
        %v1093 = vmul.f32 %v1085, %v1092
        %v1094 = vadd.f32 %v1093, 0.0
        %v1095 = vpack.c.bf16 %v1093, %v1093
        %v1097 = vsel %vm1033, %v1095, 0
        %vm1099 = vcmask 1043456
        %v1101 = vsel %vm1099, %v1028, 0
        %1103 = vmatprep.subr.bf16.mxu0 0
        %1104 = vmatpush1.bf16.msra.mxu0 %v1101
        %1105 = vmatprep.subr.bf16.mxu0 0
        %1106 = vmatpush1.bf16.msra.mxu0 0
        %1107 = vmatprep.subr.bf16.mxu0 0
        %1108 = vmatpush1.bf16.msra.mxu0 0
        %1109 = vmatprep.subr.bf16.mxu0 0
        %1110 = vmatpush1.bf16.msra.mxu0 0
        %1111 = vmatprep.subr.bf16.mxu0 0
        %1112 = vmatpush1.bf16.msra.mxu0 0
        %1113 = vmatprep.subr.bf16.mxu0 0
        %1114 = vmatpush1.bf16.msra.mxu0 0
        %1115 = vmatprep.subr.bf16.mxu0 0
        %1116 = vmatpush1.bf16.msra.mxu0 0
        %1117 = vmatprep.subr.bf16.mxu0 0
        %1118 = vmatpush1.bf16.msra.mxu0 0
        %1119 = vmatprep.subr.bf16.mxu0 0
        %1120 = vmatpush1.bf16.msra.mxu0 0
        %1121 = vmatprep.subr.bf16.mxu0 0
        %1122 = vmatpush1.bf16.msra.mxu0 0
        %1123 = vmatprep.subr.bf16.mxu0 0
        %1124 = vmatpush1.bf16.msra.mxu0 0
        %1125 = vmatprep.subr.bf16.mxu0 0
        %1126 = vmatpush1.bf16.msra.mxu0 0
        %1127 = vmatprep.subr.bf16.mxu0 0
        %1128 = vmatpush1.bf16.msra.mxu0 0
        %1129 = vmatprep.subr.bf16.mxu0 0
        %1130 = vmatpush1.bf16.msra.mxu0 0
        %1131 = vmatprep.subr.bf16.mxu0 0
        %1132 = vmatpush1.bf16.msra.mxu0 0
        %1133 = vmatprep.subr.bf16.mxu0 0
        %1134 = vmatpush1.bf16.msra.mxu0 0
        %1135 = vmatprep.mubr.bf16.mxu0 0
        %1136 = vmatmul.mubr.bf16.gmra.mrb[0].mxu0 %v1097
        %v1137 = vpop.f32.mrb[0].mxu0
        %v1138 = vadd.f32 0.0, %v1137
        %v1139 = vpop.f32.mrb[0].mxu0
        %v1140 = vpop.f32.mrb[0].mxu0
        %v1141 = vpop.f32.mrb[0].mxu0
        %1142 = vdwg.mxu0
        %v1143 = vpack.c.bf16 %v1138, %v1138
        %1145 = vrot.lane.b32.xlu0 %v1026, 120
        %v1146 = vpop.permute.xlu0 %1145
        %1148 = vrot.lane.b32.xlu0 %v1027, 120
        %v1149 = vpop.permute.xlu0 %1148
        %v1151 = vsel %vm1033, %v1146, 0
        %v1154 = vsel %vm1033, %v1149, 0
        %1156 = vmatprep.subr.bf16.mxu0 0
        %1157 = vmatpush1.bf16.xpose.msra.mxu0 %v1154
        %1158 = vmatprep.subr.bf16.mxu0 0
        %1159 = vmatpush1.bf16.xpose.msra.mxu0 0
        %1160 = vmatprep.subr.bf16.mxu0 0
        %1161 = vmatpush1.bf16.xpose.msra.mxu0 0
        %1162 = vmatprep.subr.bf16.mxu0 0
        %1163 = vmatpush1.bf16.xpose.msra.mxu0 0
        %1164 = vmatprep.subr.bf16.mxu0 0
        %1165 = vmatpush1.bf16.xpose.msra.mxu0 0
        %1166 = vmatprep.subr.bf16.mxu0 0
        %1167 = vmatpush1.bf16.xpose.msra.mxu0 0
        %1168 = vmatprep.subr.bf16.mxu0 0
        %1169 = vmatpush1.bf16.xpose.msra.mxu0 0
        %1170 = vmatprep.subr.bf16.mxu0 0
        %1171 = vmatpush1.bf16.xpose.msra.mxu0 0
        %1172 = vmatprep.subr.bf16.mxu0 0
        %1173 = vmatpush1.bf16.xpose.msra.mxu0 0
        %1174 = vmatprep.subr.bf16.mxu0 0
        %1175 = vmatpush1.bf16.xpose.msra.mxu0 0
        %1176 = vmatprep.subr.bf16.mxu0 0
        %1177 = vmatpush1.bf16.xpose.msra.mxu0 0
        %1178 = vmatprep.subr.bf16.mxu0 0
        %1179 = vmatpush1.bf16.xpose.msra.mxu0 0
        %1180 = vmatprep.subr.bf16.mxu0 0
        %1181 = vmatpush1.bf16.xpose.msra.mxu0 0
        %1182 = vmatprep.subr.bf16.mxu0 0
        %1183 = vmatpush1.bf16.xpose.msra.mxu0 0
        %1184 = vmatprep.subr.bf16.mxu0 0
        %1185 = vmatpush1.bf16.xpose.msra.mxu0 0
        %1186 = vmatprep.subr.bf16.mxu0 0
        %1187 = vmatpush1.bf16.xpose.msra.mxu0 0
        %1188 = vmatprep.mubr.bf16.mxu0 0
        %1189 = vmatmul.mubr.bf16.gmra.mrb[0].mxu0 %v1151
        %v1190 = vpop.f32.mrb[0].mxu0
        %v1191 = vadd.f32 0.0, %v1190
        %v1192 = vpop.f32.mrb[0].mxu0
        %v1193 = vpop.f32.mrb[0].mxu0
        %v1194 = vpop.f32.mrb[0].mxu0
        %1195 = vdwg.mxu0
        %v1196 = vsel %vm1033, %v1191, -inf
        %1197 = vmax.xlane.f32.xlu0 %v1196
        %v1198 = vpop.xlane.xlu0 %1197
        %v1199 = vsub.f32 %v1191, %v1198
        %v1200 = vmul.f32 %v1199, 1.442695
        %v1201 = vpow.pop %v1200
        %v1202 = vsel %vm1033, %v1201, 0.0
        %1203 = vadd.xlane.f32.xlu0 %v1202
        %v1204 = vpop.xlane.xlu0 %1203
        %v1205 = vrcp.pop %v1204
        %v1206 = vmul.f32 %v1204, %v1205
        %v1207 = vsub.f32 2.0, %v1206
        %v1208 = vmul.f32 %v1205, %v1207
        %v1209 = vmul.f32 %v1201, %v1208
        %v1210 = vadd.f32 %v1094, %v1209
        %v1211 = vpack.c.bf16 %v1209, %v1209
        %1213 = vrot.lane.b32.xlu0 %v1028, 120
        %v1214 = vpop.permute.xlu0 %1213
        %v1216 = vsel %vm1033, %v1211, 0
        %v1219 = vsel %vm1099, %v1214, 0
        %1221 = vmatprep.subr.bf16.mxu0 0
        %1222 = vmatpush1.bf16.msra.mxu0 %v1219
        %1223 = vmatprep.subr.bf16.mxu0 0
        %1224 = vmatpush1.bf16.msra.mxu0 0
        %1225 = vmatprep.subr.bf16.mxu0 0
        %1226 = vmatpush1.bf16.msra.mxu0 0
        %1227 = vmatprep.subr.bf16.mxu0 0
        %1228 = vmatpush1.bf16.msra.mxu0 0
        %1229 = vmatprep.subr.bf16.mxu0 0
        %1230 = vmatpush1.bf16.msra.mxu0 0
        %1231 = vmatprep.subr.bf16.mxu0 0
        %1232 = vmatpush1.bf16.msra.mxu0 0
        %1233 = vmatprep.subr.bf16.mxu0 0
        %1234 = vmatpush1.bf16.msra.mxu0 0
        %1235 = vmatprep.subr.bf16.mxu0 0
        %1236 = vmatpush1.bf16.msra.mxu0 0
        %1237 = vmatprep.subr.bf16.mxu0 0
        %1238 = vmatpush1.bf16.msra.mxu0 0
        %1239 = vmatprep.subr.bf16.mxu0 0
        %1240 = vmatpush1.bf16.msra.mxu0 0
        %1241 = vmatprep.subr.bf16.mxu0 0
        %1242 = vmatpush1.bf16.msra.mxu0 0
        %1243 = vmatprep.subr.bf16.mxu0 0
        %1244 = vmatpush1.bf16.msra.mxu0 0
        %1245 = vmatprep.subr.bf16.mxu0 0
        %1246 = vmatpush1.bf16.msra.mxu0 0
        %1247 = vmatprep.subr.bf16.mxu0 0
        %1248 = vmatpush1.bf16.msra.mxu0 0
        %1249 = vmatprep.subr.bf16.mxu0 0
        %1250 = vmatpush1.bf16.msra.mxu0 0
        %1251 = vmatprep.subr.bf16.mxu0 0
        %1252 = vmatpush1.bf16.msra.mxu0 0
        %1253 = vmatprep.mubr.bf16.mxu0 0
        %1254 = vmatmul.mubr.bf16.gmra.mrb[0].mxu0 %v1216
        %v1255 = vpop.f32.mrb[0].mxu0
        %v1256 = vadd.f32 0.0, %v1255
        %v1257 = vpop.f32.mrb[0].mxu0
        %v1258 = vpop.f32.mrb[0].mxu0
        %v1259 = vpop.f32.mrb[0].mxu0
        %1260 = vdwg.mxu0
        %v1261 = vpack.c.bf16 %v1256, %v1256
        %v1263 = vsel %vm1033, %v1261, 0
        %v1266 = vsel %vm1099, %v1030, 0
        %1268 = vmatprep.subr.bf16.mxu0 0
        %1269 = vmatpush1.bf16.msra.mxu0 %v1266
        %1270 = vmatprep.subr.bf16.mxu0 0
        %1271 = vmatpush1.bf16.msra.mxu0 0
        %1272 = vmatprep.subr.bf16.mxu0 0
        %1273 = vmatpush1.bf16.msra.mxu0 0
        %1274 = vmatprep.subr.bf16.mxu0 0
        %1275 = vmatpush1.bf16.msra.mxu0 0
        %1276 = vmatprep.subr.bf16.mxu0 0
        %1277 = vmatpush1.bf16.msra.mxu0 0
        %1278 = vmatprep.subr.bf16.mxu0 0
        %1279 = vmatpush1.bf16.msra.mxu0 0
        %1280 = vmatprep.subr.bf16.mxu0 0
        %1281 = vmatpush1.bf16.msra.mxu0 0
        %1282 = vmatprep.subr.bf16.mxu0 0
        %1283 = vmatpush1.bf16.msra.mxu0 0
        %1284 = vmatprep.subr.bf16.mxu0 0
        %1285 = vmatpush1.bf16.msra.mxu0 0
        %1286 = vmatprep.subr.bf16.mxu0 0
        %1287 = vmatpush1.bf16.msra.mxu0 0
        %1288 = vmatprep.subr.bf16.mxu0 0
        %1289 = vmatpush1.bf16.msra.mxu0 0
        %1290 = vmatprep.subr.bf16.mxu0 0
        %1291 = vmatpush1.bf16.msra.mxu0 0
        %1292 = vmatprep.subr.bf16.mxu0 0
        %1293 = vmatpush1.bf16.msra.mxu0 0
        %1294 = vmatprep.subr.bf16.mxu0 0
        %1295 = vmatpush1.bf16.msra.mxu0 0
        %1296 = vmatprep.subr.bf16.mxu0 0
        %1297 = vmatpush1.bf16.msra.mxu0 0
        %1298 = vmatprep.subr.bf16.mxu0 0
        %1299 = vmatpush1.bf16.msra.mxu0 0
        %1300 = vmatprep.mubr.bf16.mxu0 0
        %1301 = vmatmul.mubr.bf16.gmra.mrb[0].mxu0 %v1263
        %v1302 = vpop.f32.mrb[0].mxu0
        %v1303 = vadd.f32 0.0, %v1302
        %v1304 = vpop.f32.mrb[0].mxu0
        %v1305 = vpop.f32.mrb[0].mxu0
        %v1306 = vpop.f32.mrb[0].mxu0
        %1307 = vdwg.mxu0
        %v1309 = vsel %vm1033, %v1143, 0
        %v1312 = vsel %vm1099, %v1029, 0
        %1314 = vmatprep.subr.bf16.mxu0 0
        %1315 = vmatpush1.bf16.msra.mxu0 %v1312
        %1316 = vmatprep.subr.bf16.mxu0 0
        %1317 = vmatpush1.bf16.msra.mxu0 0
        %1318 = vmatprep.subr.bf16.mxu0 0
        %1319 = vmatpush1.bf16.msra.mxu0 0
        %1320 = vmatprep.subr.bf16.mxu0 0
        %1321 = vmatpush1.bf16.msra.mxu0 0
        %1322 = vmatprep.subr.bf16.mxu0 0
        %1323 = vmatpush1.bf16.msra.mxu0 0
        %1324 = vmatprep.subr.bf16.mxu0 0
        %1325 = vmatpush1.bf16.msra.mxu0 0
        %1326 = vmatprep.subr.bf16.mxu0 0
        %1327 = vmatpush1.bf16.msra.mxu0 0
        %1328 = vmatprep.subr.bf16.mxu0 0
        %1329 = vmatpush1.bf16.msra.mxu0 0
        %1330 = vmatprep.subr.bf16.mxu0 0
        %1331 = vmatpush1.bf16.msra.mxu0 0
        %1332 = vmatprep.subr.bf16.mxu0 0
        %1333 = vmatpush1.bf16.msra.mxu0 0
        %1334 = vmatprep.subr.bf16.mxu0 0
        %1335 = vmatpush1.bf16.msra.mxu0 0
        %1336 = vmatprep.subr.bf16.mxu0 0
        %1337 = vmatpush1.bf16.msra.mxu0 0
        %1338 = vmatprep.subr.bf16.mxu0 0
        %1339 = vmatpush1.bf16.msra.mxu0 0
        %1340 = vmatprep.subr.bf16.mxu0 0
        %1341 = vmatpush1.bf16.msra.mxu0 0
        %1342 = vmatprep.subr.bf16.mxu0 0
        %1343 = vmatpush1.bf16.msra.mxu0 0
        %1344 = vmatprep.subr.bf16.mxu0 0
        %1345 = vmatpush1.bf16.msra.mxu0 0
        %1346 = vmatprep.mubr.bf16.mxu0 0
        %1347 = vmatmul.mubr.bf16.gmra.mrb[0].mxu0 %v1309
        %v1348 = vpop.f32.mrb[0].mxu0
        %v1349 = vadd.f32 %v1303, %v1348
        %v1350 = vpop.f32.mrb[0].mxu0
        %v1351 = vpop.f32.mrb[0].mxu0
        %v1352 = vpop.f32.mrb[0].mxu0
        %1353 = vdwg.mxu0
        %1354 = vrot.lane.b32.xlu0 %v1026, 112
        %v1355 = vpop.permute.xlu0 %1354
        %1356 = vrot.lane.b32.xlu0 %v1027, 112
        %v1357 = vpop.permute.xlu0 %1356
        %v1359 = vsel %vm1033, %v1355, 0
        %v1362 = vsel %vm1033, %v1357, 0
        %1364 = vmatprep.subr.bf16.mxu0 0
        %1365 = vmatpush1.bf16.xpose.msra.mxu0 %v1362
        %1366 = vmatprep.subr.bf16.mxu0 0
        %1367 = vmatpush1.bf16.xpose.msra.mxu0 0
        %1368 = vmatprep.subr.bf16.mxu0 0
        %1369 = vmatpush1.bf16.xpose.msra.mxu0 0
        %1370 = vmatprep.subr.bf16.mxu0 0
        %1371 = vmatpush1.bf16.xpose.msra.mxu0 0
        %1372 = vmatprep.subr.bf16.mxu0 0
        %1373 = vmatpush1.bf16.xpose.msra.mxu0 0
        %1374 = vmatprep.subr.bf16.mxu0 0
        %1375 = vmatpush1.bf16.xpose.msra.mxu0 0
        %1376 = vmatprep.subr.bf16.mxu0 0
        %1377 = vmatpush1.bf16.xpose.msra.mxu0 0
        %1378 = vmatprep.subr.bf16.mxu0 0
        %1379 = vmatpush1.bf16.xpose.msra.mxu0 0
        %1380 = vmatprep.subr.bf16.mxu0 0
        %1381 = vmatpush1.bf16.xpose.msra.mxu0 0
        %1382 = vmatprep.subr.bf16.mxu0 0
        %1383 = vmatpush1.bf16.xpose.msra.mxu0 0
        %1384 = vmatprep.subr.bf16.mxu0 0
        %1385 = vmatpush1.bf16.xpose.msra.mxu0 0
        %1386 = vmatprep.subr.bf16.mxu0 0
        %1387 = vmatpush1.bf16.xpose.msra.mxu0 0
        %1388 = vmatprep.subr.bf16.mxu0 0
        %1389 = vmatpush1.bf16.xpose.msra.mxu0 0
        %1390 = vmatprep.subr.bf16.mxu0 0
        %1391 = vmatpush1.bf16.xpose.msra.mxu0 0
        %1392 = vmatprep.subr.bf16.mxu0 0
        %1393 = vmatpush1.bf16.xpose.msra.mxu0 0
        %1394 = vmatprep.subr.bf16.mxu0 0
        %1395 = vmatpush1.bf16.xpose.msra.mxu0 0
        %1396 = vmatprep.mubr.bf16.mxu0 0
        %1397 = vmatmul.mubr.bf16.gmra.mrb[0].mxu0 %v1359
        %v1398 = vpop.f32.mrb[0].mxu0
        %v1399 = vadd.f32 0.0, %v1398
        %v1400 = vpop.f32.mrb[0].mxu0
        %v1401 = vpop.f32.mrb[0].mxu0
        %v1402 = vpop.f32.mrb[0].mxu0
        %1403 = vdwg.mxu0
        %v1404 = vsel %vm1033, %v1399, -inf
        %1405 = vmax.xlane.f32.xlu0 %v1404
        %v1406 = vpop.xlane.xlu0 %1405
        %v1407 = vsub.f32 %v1399, %v1406
        %v1408 = vmul.f32 %v1407, 1.442695
        %v1409 = vpow.pop %v1408
        %v1410 = vsel %vm1033, %v1409, 0.0
        %1411 = vadd.xlane.f32.xlu0 %v1410
        %v1412 = vpop.xlane.xlu0 %1411
        %v1413 = vrcp.pop %v1412
        %v1414 = vmul.f32 %v1412, %v1413
        %v1415 = vsub.f32 2.0, %v1414
        %v1416 = vmul.f32 %v1413, %v1415
        %v1417 = vmul.f32 %v1409, %v1416
        %v1418 = vadd.f32 %v1210, %v1417
        %v1419 = vpack.c.bf16 %v1417, %v1417
        %1420 = vrot.lane.b32.xlu0 %v1028, 112
        %v1421 = vpop.permute.xlu0 %1420
        %v1423 = vsel %vm1033, %v1419, 0
        %v1426 = vsel %vm1099, %v1421, 0
        %1428 = vmatprep.subr.bf16.mxu0 0
        %1429 = vmatpush1.bf16.msra.mxu0 %v1426
        %1430 = vmatprep.subr.bf16.mxu0 0
        %1431 = vmatpush1.bf16.msra.mxu0 0
        %1432 = vmatprep.subr.bf16.mxu0 0
        %1433 = vmatpush1.bf16.msra.mxu0 0
        %1434 = vmatprep.subr.bf16.mxu0 0
        %1435 = vmatpush1.bf16.msra.mxu0 0
        %1436 = vmatprep.subr.bf16.mxu0 0
        %1437 = vmatpush1.bf16.msra.mxu0 0
        %1438 = vmatprep.subr.bf16.mxu0 0
        %1439 = vmatpush1.bf16.msra.mxu0 0
        %1440 = vmatprep.subr.bf16.mxu0 0
        %1441 = vmatpush1.bf16.msra.mxu0 0
        %1442 = vmatprep.subr.bf16.mxu0 0
        %1443 = vmatpush1.bf16.msra.mxu0 0
        %1444 = vmatprep.subr.bf16.mxu0 0
        %1445 = vmatpush1.bf16.msra.mxu0 0
        %1446 = vmatprep.subr.bf16.mxu0 0
        %1447 = vmatpush1.bf16.msra.mxu0 0
        %1448 = vmatprep.subr.bf16.mxu0 0
        %1449 = vmatpush1.bf16.msra.mxu0 0
        %1450 = vmatprep.subr.bf16.mxu0 0
        %1451 = vmatpush1.bf16.msra.mxu0 0
        %1452 = vmatprep.subr.bf16.mxu0 0
        %1453 = vmatpush1.bf16.msra.mxu0 0
        %1454 = vmatprep.subr.bf16.mxu0 0
        %1455 = vmatpush1.bf16.msra.mxu0 0
        %1456 = vmatprep.subr.bf16.mxu0 0
        %1457 = vmatpush1.bf16.msra.mxu0 0
        %1458 = vmatprep.subr.bf16.mxu0 0
        %1459 = vmatpush1.bf16.msra.mxu0 0
        %1460 = vmatprep.mubr.bf16.mxu0 0
        %1461 = vmatmul.mubr.bf16.gmra.mrb[0].mxu0 %v1423
        %v1462 = vpop.f32.mrb[0].mxu0
        %v1463 = vadd.f32 0.0, %v1462
        %v1464 = vpop.f32.mrb[0].mxu0
        %v1465 = vpop.f32.mrb[0].mxu0
        %v1466 = vpop.f32.mrb[0].mxu0
        %1467 = vdwg.mxu0
        %v1468 = vpack.c.bf16 %v1463, %v1463
        %v1470 = vsel %vm1033, %v1468, 0
        %v1473 = vsel %vm1099, %v1031, 0
        %1475 = vmatprep.subr.bf16.mxu0 0
        %1476 = vmatpush1.bf16.msra.mxu0 %v1473
        %1477 = vmatprep.subr.bf16.mxu0 0
        %1478 = vmatpush1.bf16.msra.mxu0 0
        %1479 = vmatprep.subr.bf16.mxu0 0
        %1480 = vmatpush1.bf16.msra.mxu0 0
        %1481 = vmatprep.subr.bf16.mxu0 0
        %1482 = vmatpush1.bf16.msra.mxu0 0
        %1483 = vmatprep.subr.bf16.mxu0 0
        %1484 = vmatpush1.bf16.msra.mxu0 0
        %1485 = vmatprep.subr.bf16.mxu0 0
        %1486 = vmatpush1.bf16.msra.mxu0 0
        %1487 = vmatprep.subr.bf16.mxu0 0
        %1488 = vmatpush1.bf16.msra.mxu0 0
        %1489 = vmatprep.subr.bf16.mxu0 0
        %1490 = vmatpush1.bf16.msra.mxu0 0
        %1491 = vmatprep.subr.bf16.mxu0 0
        %1492 = vmatpush1.bf16.msra.mxu0 0
        %1493 = vmatprep.subr.bf16.mxu0 0
        %1494 = vmatpush1.bf16.msra.mxu0 0
        %1495 = vmatprep.subr.bf16.mxu0 0
        %1496 = vmatpush1.bf16.msra.mxu0 0
        %1497 = vmatprep.subr.bf16.mxu0 0
        %1498 = vmatpush1.bf16.msra.mxu0 0
        %1499 = vmatprep.subr.bf16.mxu0 0
        %1500 = vmatpush1.bf16.msra.mxu0 0
        %1501 = vmatprep.subr.bf16.mxu0 0
        %1502 = vmatpush1.bf16.msra.mxu0 0
        %1503 = vmatprep.subr.bf16.mxu0 0
        %1504 = vmatpush1.bf16.msra.mxu0 0
        %1505 = vmatprep.subr.bf16.mxu0 0
        %1506 = vmatpush1.bf16.msra.mxu0 0
        %1507 = vmatprep.mubr.bf16.mxu0 0
        %1508 = vmatmul.mubr.bf16.gmra.mrb[0].mxu0 %v1470
        %v1509 = vpop.f32.mrb[0].mxu0
        %v1510 = vadd.f32 0.0, %v1509
        %v1511 = vpop.f32.mrb[0].mxu0
        %v1512 = vpop.f32.mrb[0].mxu0
        %v1513 = vpop.f32.mrb[0].mxu0
        %1514 = vdwg.mxu0
        %v1515 = vadd.f32 %v1349, %v1510
        %1516 = vrot.lane.b32.xlu0 %v1026, 104
        %v1517 = vpop.permute.xlu0 %1516
        %1518 = vrot.lane.b32.xlu0 %v1027, 104
        %v1519 = vpop.permute.xlu0 %1518
        %v1521 = vsel %vm1033, %v1517, 0
        %v1524 = vsel %vm1033, %v1519, 0
        %1526 = vmatprep.subr.bf16.mxu0 0
        %1527 = vmatpush1.bf16.xpose.msra.mxu0 %v1524
        %1528 = vmatprep.subr.bf16.mxu0 0
        %1529 = vmatpush1.bf16.xpose.msra.mxu0 0
        %1530 = vmatprep.subr.bf16.mxu0 0
        %1531 = vmatpush1.bf16.xpose.msra.mxu0 0
        %1532 = vmatprep.subr.bf16.mxu0 0
        %1533 = vmatpush1.bf16.xpose.msra.mxu0 0
        %1534 = vmatprep.subr.bf16.mxu0 0
        %1535 = vmatpush1.bf16.xpose.msra.mxu0 0
        %1536 = vmatprep.subr.bf16.mxu0 0
        %1537 = vmatpush1.bf16.xpose.msra.mxu0 0
        %1538 = vmatprep.subr.bf16.mxu0 0
        %1539 = vmatpush1.bf16.xpose.msra.mxu0 0
        %1540 = vmatprep.subr.bf16.mxu0 0
        %1541 = vmatpush1.bf16.xpose.msra.mxu0 0
        %1542 = vmatprep.subr.bf16.mxu0 0
        %1543 = vmatpush1.bf16.xpose.msra.mxu0 0
        %1544 = vmatprep.subr.bf16.mxu0 0
        %1545 = vmatpush1.bf16.xpose.msra.mxu0 0
        %1546 = vmatprep.subr.bf16.mxu0 0
        %1547 = vmatpush1.bf16.xpose.msra.mxu0 0
        %1548 = vmatprep.subr.bf16.mxu0 0
        %1549 = vmatpush1.bf16.xpose.msra.mxu0 0
        %1550 = vmatprep.subr.bf16.mxu0 0
        %1551 = vmatpush1.bf16.xpose.msra.mxu0 0
        %1552 = vmatprep.subr.bf16.mxu0 0
        %1553 = vmatpush1.bf16.xpose.msra.mxu0 0
        %1554 = vmatprep.subr.bf16.mxu0 0
        %1555 = vmatpush1.bf16.xpose.msra.mxu0 0
        %1556 = vmatprep.subr.bf16.mxu0 0
        %1557 = vmatpush1.bf16.xpose.msra.mxu0 0
        %1558 = vmatprep.mubr.bf16.mxu0 0
        %1559 = vmatmul.mubr.bf16.gmra.mrb[0].mxu0 %v1521
        %v1560 = vpop.f32.mrb[0].mxu0
        %v1561 = vadd.f32 0.0, %v1560
        %v1562 = vpop.f32.mrb[0].mxu0
        %v1563 = vpop.f32.mrb[0].mxu0
        %v1564 = vpop.f32.mrb[0].mxu0
        %1565 = vdwg.mxu0
        %v1566 = vsel %vm1033, %v1561, -inf
        %1567 = vmax.xlane.f32.xlu0 %v1566
        %v1568 = vpop.xlane.xlu0 %1567
        %v1569 = vsub.f32 %v1561, %v1568
        %v1570 = vmul.f32 %v1569, 1.442695
        %v1571 = vpow.pop %v1570
        %v1572 = vsel %vm1033, %v1571, 0.0
        %1573 = vadd.xlane.f32.xlu0 %v1572
        %v1574 = vpop.xlane.xlu0 %1573
        %v1575 = vrcp.pop %v1574
        %v1576 = vmul.f32 %v1574, %v1575
        %v1577 = vsub.f32 2.0, %v1576
        %v1578 = vmul.f32 %v1575, %v1577
        %v1579 = vmul.f32 %v1571, %v1578
        %v1580 = vadd.f32 %v1418, %v1579
        %v1581 = vpack.c.bf16 %v1579, %v1579
        %1582 = vrot.lane.b32.xlu0 %v1028, 104
        %v1583 = vpop.permute.xlu0 %1582
        %v1585 = vsel %vm1033, %v1581, 0
        %v1588 = vsel %vm1099, %v1583, 0
        %1590 = vmatprep.subr.bf16.mxu0 0
        %1591 = vmatpush1.bf16.msra.mxu0 %v1588
        %1592 = vmatprep.subr.bf16.mxu0 0
        %1593 = vmatpush1.bf16.msra.mxu0 0
        %1594 = vmatprep.subr.bf16.mxu0 0
        %1595 = vmatpush1.bf16.msra.mxu0 0
        %1596 = vmatprep.subr.bf16.mxu0 0
        %1597 = vmatpush1.bf16.msra.mxu0 0
        %1598 = vmatprep.subr.bf16.mxu0 0
        %1599 = vmatpush1.bf16.msra.mxu0 0
        %1600 = vmatprep.subr.bf16.mxu0 0
        %1601 = vmatpush1.bf16.msra.mxu0 0
        %1602 = vmatprep.subr.bf16.mxu0 0
        %1603 = vmatpush1.bf16.msra.mxu0 0
        %1604 = vmatprep.subr.bf16.mxu0 0
        %1605 = vmatpush1.bf16.msra.mxu0 0
        %1606 = vmatprep.subr.bf16.mxu0 0
        %1607 = vmatpush1.bf16.msra.mxu0 0
        %1608 = vmatprep.subr.bf16.mxu0 0
        %1609 = vmatpush1.bf16.msra.mxu0 0
        %1610 = vmatprep.subr.bf16.mxu0 0
        %1611 = vmatpush1.bf16.msra.mxu0 0
        %1612 = vmatprep.subr.bf16.mxu0 0
        %1613 = vmatpush1.bf16.msra.mxu0 0
        %1614 = vmatprep.subr.bf16.mxu0 0
        %1615 = vmatpush1.bf16.msra.mxu0 0
        %1616 = vmatprep.subr.bf16.mxu0 0
        %1617 = vmatpush1.bf16.msra.mxu0 0
        %1618 = vmatprep.subr.bf16.mxu0 0
        %1619 = vmatpush1.bf16.msra.mxu0 0
        %1620 = vmatprep.subr.bf16.mxu0 0
        %1621 = vmatpush1.bf16.msra.mxu0 0
        %1622 = vmatprep.mubr.bf16.mxu0 0
        %1623 = vmatmul.mubr.bf16.gmra.mrb[0].mxu0 %v1585
        %v1624 = vpop.f32.mrb[0].mxu0
        %v1625 = vadd.f32 0.0, %v1624
        %v1626 = vpop.f32.mrb[0].mxu0
        %v1627 = vpop.f32.mrb[0].mxu0
        %v1628 = vpop.f32.mrb[0].mxu0
        %1629 = vdwg.mxu0
        %v1630 = vpack.c.bf16 %v1625, %v1625
        %v1632 = vsel %vm1033, %v1630, 0
        %v1635 = vsel %vm1099, %v1032, 0
        %1637 = vmatprep.subr.bf16.mxu0 0
        %1638 = vmatpush1.bf16.msra.mxu0 %v1635
        %1639 = vmatprep.subr.bf16.mxu0 0
        %1640 = vmatpush1.bf16.msra.mxu0 0
        %1641 = vmatprep.subr.bf16.mxu0 0
        %1642 = vmatpush1.bf16.msra.mxu0 0
        %1643 = vmatprep.subr.bf16.mxu0 0
        %1644 = vmatpush1.bf16.msra.mxu0 0
        %1645 = vmatprep.subr.bf16.mxu0 0
        %1646 = vmatpush1.bf16.msra.mxu0 0
        %1647 = vmatprep.subr.bf16.mxu0 0
        %1648 = vmatpush1.bf16.msra.mxu0 0
        %1649 = vmatprep.subr.bf16.mxu0 0
        %1650 = vmatpush1.bf16.msra.mxu0 0
        %1651 = vmatprep.subr.bf16.mxu0 0
        %1652 = vmatpush1.bf16.msra.mxu0 0
        %1653 = vmatprep.subr.bf16.mxu0 0
        %1654 = vmatpush1.bf16.msra.mxu0 0
        %1655 = vmatprep.subr.bf16.mxu0 0
        %1656 = vmatpush1.bf16.msra.mxu0 0
        %1657 = vmatprep.subr.bf16.mxu0 0
        %1658 = vmatpush1.bf16.msra.mxu0 0
        %1659 = vmatprep.subr.bf16.mxu0 0
        %1660 = vmatpush1.bf16.msra.mxu0 0
        %1661 = vmatprep.subr.bf16.mxu0 0
        %1662 = vmatpush1.bf16.msra.mxu0 0
        %1663 = vmatprep.subr.bf16.mxu0 0
        %1664 = vmatpush1.bf16.msra.mxu0 0
        %1665 = vmatprep.subr.bf16.mxu0 0
        %1666 = vmatpush1.bf16.msra.mxu0 0
        %1667 = vmatprep.subr.bf16.mxu0 0
        %1668 = vmatpush1.bf16.msra.mxu0 0
        %1669 = vmatprep.mubr.bf16.mxu0 0
        %1670 = vmatmul.mubr.bf16.gmra.mrb[0].mxu0 %v1632
        %v1671 = vpop.f32.mrb[0].mxu0
        %v1672 = vadd.f32 0.0, %v1671
        %v1673 = vpop.f32.mrb[0].mxu0
        %v1674 = vpop.f32.mrb[0].mxu0
        %v1675 = vpop.f32.mrb[0].mxu0
        %1676 = vdwg.mxu0
        %v1677 = vadd.f32 %v1515, %v1672
        %v1678 = vld [vmem:[%s804] sm:$0x1]
        %v1680 = vlaneseq
        %v1681 = vshrl.u32 %v1680, 7
        %v1682 = vsub.s32 0, %v1681
        %v1683 = vrot.slane %v1678, %v1682
        %v1685 = vadd.f32 %v1677, %v1683
        %v1686 = vadd.f32 %v823, %v1685
        %v1687 = vsel %vm848, %v1686, 0.0
        %1688 = vadd.xlane.f32.xlu0 %v1687
        %v1689 = vpop.xlane.xlu0 %1688
        %v1690 = vrcp.pop 32.0
        %v1691 = vmul.f32 %v1689, %v1690
        %v1692 = vsub.f32 %v1686, %v1691
        %v1693 = vmul.f32 %v1692, %v1692
        %v1694 = vsel %vm848, %v1693, 0.0
        %1695 = vadd.xlane.f32.xlu0 %v1694
        %v1696 = vpop.xlane.xlu0 %1695
        %v1697 = vmul.f32 %v1696, %v1690
        %v1698 = vadd.f32 %v1697, 1e-05
        %v1699 = vrsqrt.pop %v1698
        %v1700 = vmul.f32 %v1692, %v1699
        %v1701 = vld [vmem:[%s807] sm:$0x1]
        %v1703 = vlaneseq
        %v1704 = vshrl.u32 %v1703, 7
        %v1705 = vsub.s32 0, %v1704
        %v1706 = vrot.slane %v1701, %v1705
        %v1708 = vmul.f32 %v1700, %v1706
        %v1709 = vld [vmem:[%s810] sm:$0x1]
        %v1711 = vlaneseq
        %v1712 = vshrl.u32 %v1711, 7
        %v1713 = vsub.s32 0, %v1712
        %v1714 = vrot.slane %v1709, %v1713
        %v1716 = vadd.f32 %v1708, %v1714
        %1717 = vst.msk [vmem:[#allocation2] sm:$0xff] %vm848, %v1716
        %p1718 = scmp.eq.s32.totalorder %s46, 1
        // Predicated region
        $region105: #{tpu_custom_call.1} parent=71 // pred_check
          %p1719 = pneg %p1718
        $region106: #{tpu_custom_call.1} parent=71 // pred_check_branch
          %1721 = sbr.rel (%p1719) target = $region108
        $region107: #{tpu_custom_call.1} parent=71 // pred_region
          %1722 = vst.msk [vmem:[%s786] sm:$0xff] %vm848, %v1716
          %v1723 = vmul.f32 %v1580, 0.25
          %1724 = vst.msk [vmem:[%s814] sm:$0xff] %vm1033, %v1723
        $region108: #{tpu_custom_call.1} parent=71 // pred_fallthru
          _
        %s1725 = sand.u32 %s399, 1
        %s1726 = scalar_lea.sflag [#allocation5], %s1725
        %s1727 = sand.u32 %s399, 1
        %s1728 = smul.addr %s1727, 8
        %s1729 = scalar_lea.vmem [#allocation15], %s1728
        %p1730 = scmp.lt.s32.totalorder %s45, 1
        %s1731 = scalar_select %p1730, %s45, 1
        %s1732 = smul.addr %s1731, 8
        %s1733 = scalar_lea.vmem %s14, %s1732
        // Predicated region
        $region109: #{tpu_custom_call.1} parent=71 // pred_check
          %p1734 = pneg %p409
        $region110: #{tpu_custom_call.1} parent=71 // pred_check_branch
          %1736 = sbr.rel (%p1734) target = $region112
        $region111: #{tpu_custom_call.1} parent=71 // pred_region
          %s1738 = ssub.s32 128, 128
          %1739 = vsyncadd %s1726, %s1738
          %s1740 = smul.addr %s45, 128
          %s1741 = scalar_lea.hbm %s13, %s1740
          %s1743 = sshll.u32 %s1729, 4
          %s1744 = int_to_ptr.vmem [resolvable:$true] %s1743
          %1746 = dma.vmem_to_hbm [thread:$0]  %s1744, 128, %s1741, %s1726
        $region112: #{tpu_custom_call.1} parent=71 // pred_fallthru
          _
        // Predicated region
        $region113: #{tpu_custom_call.1} parent=71 // pred_check
          %p1747 = pneg %p435
        $region114: #{tpu_custom_call.1} parent=71 // pred_check_branch
          %1749 = sbr.rel (%p1747) target = $region116
        $region115: #{tpu_custom_call.1} parent=71 // pred_region
          _
        $region116: #{tpu_custom_call.1} parent=71 // pred_fallthru
          _
      $region72: #{tpu_custom_call.1} parent=5 // pred_fallthru
        _
      %p1750 = scmp.le.s32.totalorder 2, %s36
      // Predicated region
      $region117: #{tpu_custom_call.1} parent=5 // pred_check
        %p1751 = pneg %p1750
      $region118: #{tpu_custom_call.1} parent=5 // pred_check_branch
        %1753 = sbr.rel (%p1751) target = $region120
      $region119: #{tpu_custom_call.1} parent=5 // pred_region
        %s1754 = ssub.s32 %s36, 2
        // Predicated region
        $region121: #{tpu_custom_call.1} parent=119 // pred_check
          %p1755 = pneg %p415
        $region122: #{tpu_custom_call.1} parent=119 // pred_check_branch
          %1757 = sbr.rel (%p1755) target = $region124
        $region123: #{tpu_custom_call.1} parent=119 // pred_region
          %s1758 = sand.u32 %s400, 1
          %s1759 = scalar_lea.sflag [#allocation5], %s1758
          %s1760 = sand.u32 %s400, 1
          %s1761 = smul.addr %s1760, 8
          %s1762 = scalar_lea.vmem [#allocation15], %s1761
          %1763 = dma.done %s1759, 128
        $region124: #{tpu_custom_call.1} parent=119 // pred_fallthru
          _
        // Predicated region
        $region125: #{tpu_custom_call.1} parent=119 // pred_check
          %p1764 = pneg %p441
        $region126: #{tpu_custom_call.1} parent=119 // pred_check_branch
          %1766 = sbr.rel (%p1764) target = $region128
        $region127: #{tpu_custom_call.1} parent=119 // pred_region
          %p1767 = scmp.lt.s32.totalorder %s47, 1
          %s1768 = scalar_select %p1767, %s47, 1
          %s1769 = smul.addr %s1768, 8
          %s1770 = scalar_lea.vmem %s14, %s1769
        $region128: #{tpu_custom_call.1} parent=119 // pred_fallthru
          _
      $region120: #{tpu_custom_call.1} parent=5 // pred_fallthru
        _
    $region6: #{tpu_custom_call.1} parent=1 // loop_footer
      %s40 = sadd.s32 1, %s36
    $region7: #{tpu_custom_call.1} parent=1 // loop_footer_branch
      %35 = sbr.rel target = $region3
    $region8: #{tpu_custom_call.1} parent=1 // loop_exit
      _
    %1771 = vsyncpa [#allocation4], 1
    %s1772 = scalar_lea.sflag [#allocation4], 1
    %1773 = vsyncpa %s1772, 1
    %1774 = vsyncpa [#allocation7], 1
    %s1775 = scalar_lea.sflag [#allocation7], 1
    %1776 = vsyncpa %s1775, 1
    %1777 = vsyncpa [#allocation10], 1
    %s1778 = scalar_lea.sflag [#allocation10], 1
    %1779 = vsyncpa %s1778, 1
    %1780 = vsyncpa [#allocation13], 1
    %s1781 = scalar_lea.sflag [#allocation13], 1
    %1782 = vsyncpa %s1781, 1
    %1783 = vsyncpa [#allocation5], 1
    %s1784 = scalar_lea.sflag [#allocation5], 1
    %1785 = vsyncpa %s1784, 1

</llo_original>
